<compile_context>
chip_gen: v5e
topology: v5e:2x2
jax: 0.10.0
libtpu: 0.0.40
codegen_flags: <defaults>
</compile_context>

<pallas_src>
import jax
import jax.numpy as jnp
from jax.experimental import pallas as pl
from jax.experimental.pallas import tpu as pltpu

INPUT_SIZE = 8
LATENT = 2
L = 10
_HALF_LOG_2PI = 0.9189385332046727  # 0.5 * log(2*pi)

# ---- packed parameter slab layout -------------------------------------------
# Every parameter block starts on an 8-sublane boundary so all in-kernel row
# slices are free views.  Weight W (out, in) sits at [row:row+out, 0:in]; its
# bias (out, 1) sits right next to it at [row:row+out, in:in+1].
R_EW1, R_EW2, R_EW3M, R_EW3V = 0, 8, 16, 24   # encoder (+ split latent heads)
R_DW1, R_DW2, R_DW3 = 32, 40, 48              # decoder (+ FUSED recon head)
SLAB_ROWS, SLAB_COLS = 64, 128


def _vae_loss_kernel(x_ref, eps_ref, p_ref, out_ref, z_ref):
    # x: (INPUT_SIZE, TB) — features on sublanes, batch on lanes.
    x = x_ref[...]
    tb = x.shape[1]

    def wb(row, n_out, n_in):
        # Static views into the packed parameter slab.
        return (p_ref[row:row + n_out, 0:n_in],
                p_ref[row:row + n_out, n_in:n_in + 1])

    ew1, eb1 = wb(R_EW1, 8, INPUT_SIZE)
    ew2, eb2 = wb(R_EW2, 4, 8)
    ew3m, eb3m = wb(R_EW3M, LATENT, 4)
    ew3v, eb3v = wb(R_EW3V, LATENT, 4)
    dw1, db1 = wb(R_DW1, 4, LATENT)
    dw2, db2 = wb(R_DW2, 8, 4)
    dw3, db3 = wb(R_DW3, 2 * INPUT_SIZE, 8)

    # ---- encoder: Linear(8,8) ReLU Linear(8,4) ReLU split-head Linear(4,lat) ----
    h = jnp.maximum(jnp.dot(ew1, x, preferred_element_type=jnp.float32) + eb1, 0.0)
    h = jnp.maximum(jnp.dot(ew2, h, preferred_element_type=jnp.float32) + eb2, 0.0)
    mu = jnp.dot(ew3m, h, preferred_element_type=jnp.float32) + eb3m       # (lat, TB)
    logvar = jnp.dot(ew3v, h, preferred_element_type=jnp.float32) + eb3v   # (lat, TB)
    std = jnp.exp(0.5 * logvar)

    # ---- reparameterize: write each of the L samples straight into the
    #      (lat, L*TB) decoder operand (no [mu]*L / [std]*L concatenates) ----
    for l in range(L):
        sl = slice(l * tb, (l + 1) * tb)              # 128-aligned lane group
        z_ref[:, sl] = mu + std * eps_ref[:, sl]

    # ---- decoder: ONE pass over all L samples, fused (mu|logvar) head ----
    z = z_ref[...]                                                         # (lat, L*TB)
    d = jnp.maximum(jnp.dot(dw1, z, preferred_element_type=jnp.float32) + db1, 0.0)
    d = jnp.maximum(jnp.dot(dw2, d, preferred_element_type=jnp.float32) + db2, 0.0)
    r = jnp.dot(dw3, d, preferred_element_type=jnp.float32) + db3          # (2*Din, L*TB)

    # ---- Gaussian log-prob, accumulated per lane-group against x directly.
    #      logp = -0.5*(diff^2 * exp(-rlogvar) + rlogvar) - 0.5*log(2*pi)
    #      (the constant is added once to the final scalar below) ----
    acc = jnp.zeros_like(x)                                                # (Din, TB)
    for l in range(L):
        sl = slice(l * tb, (l + 1) * tb)
        rmu = r[0:INPUT_SIZE, sl]                      # free sublane/lane-aligned views
        rlogvar = r[INPUT_SIZE:2 * INPUT_SIZE, sl]
        diff = x - rmu
        acc = acc + (diff * diff * jnp.exp(-rlogvar) + rlogvar)
    # sum(logp) = -0.5 * sum(acc) - Din*L*TB*0.5*log(2*pi)

    # ---- KL(N(mu, std) || N(0, 1)); std*std keeps it off the single EUP port ----
    kl = 0.5 * (std * std + mu * mu - 1.0 - logvar)                        # (lat, TB)

    # ---- single final reduction -> per-tile partial loss ----
    loss = (jnp.sum(kl) / LATENT
            + 0.5 * jnp.sum(acc) / (L * INPUT_SIZE)
            + tb * _HALF_LOG_2PI)

    # Lane-dense broadcast store.  NOTE: the wrapper must read out[:, 0, 0] only
    # (summing the whole block would give a 1024x-scaled result).
    out_ref[...] = jnp.full(out_ref.shape, loss, dtype=out_ref.dtype)


def pack_params(params):
    """Pack the 16 Linear weights/biases into one (64, 128) f32 slab.

    The decoder mu/logvar head is fused along the free 8-sublane boundary; the
    encoder latent heads (2 rows each) stay split.
    """
    (ew1, eb1, ew2, eb2, ew3m, eb3m, ew3v, eb3v,
     dw1, db1, dw2, db2, dw3m, db3m, dw3v, db3v) = params
    dw3 = jnp.concatenate([dw3m, dw3v], axis=0)        # (16, 8)
    db3 = jnp.concatenate([db3m, db3v], axis=0)        # (16, 1)
    slab = jnp.zeros((SLAB_ROWS, SLAB_COLS), jnp.float32)

    def put(s, row, w, b):
        n_out, n_in = w.shape
        s = s.at[row:row + n_out, 0:n_in].set(w)
        return s.at[row:row + n_out, n_in:n_in + 1].set(b)

    slab = put(slab, R_EW1, ew1, eb1)
    slab = put(slab, R_EW2, ew2, eb2)
    slab = put(slab, R_EW3M, ew3m, eb3m)
    slab = put(slab, R_EW3V, ew3v, eb3v)
    slab = put(slab, R_DW1, dw1, db1)
    slab = put(slab, R_DW2, dw2, db2)
    slab = put(slab, R_DW3, dw3, db3)
    return slab


def _pick_tb(B, max_tb=2048):
    """Largest lane-aligned batch tile, preferring a small even grid so v7x's
    two TensorCores both get work while per-grid-step overhead is amortized."""
    assert B % 128 == 0, "batch must be a multiple of 128"
    # TODO(synk): no ragged-batch path; arbitrary B would need a padded/masked tail tile.
    n_tiles = 2
    while n_tiles <= B // 128:
        tb = B // n_tiles
        if B % n_tiles == 0 and tb % 128 == 0 and tb <= max_tb:
            return tb
        n_tiles += 2
    return min(B, max_tb) if B % min(B, max_tb) == 0 else 128


def vae_anomaly_loss(x, eps, params, tb=None):
    """x: (B, INPUT_SIZE); eps: (L, B, LATENT) (torch rsample([L]) draw order)."""
    B = x.shape[0]
    if tb is None:
        tb = _pick_tb(B)
    assert B % tb == 0 and tb % 128 == 0
    n_tiles = B // tb

    slab = pack_params(params)

    # Layout plumbing (wrapper-side, not compute): batch -> lanes, and the L
    # samples stacked along lanes within each batch tile:
    #   eps2[d, i*L*tb + l*tb + b] = eps[l, i*tb + b, d]
    x2 = x.T                                                   # (Din, B)
    eps2 = (eps.reshape(L, n_tiles, tb, LATENT)
               .transpose(3, 1, 0, 2)
               .reshape(LATENT, n_tiles * L * tb))

    out = pl.pallas_call(
        _vae_loss_kernel,
        out_shape=jax.ShapeDtypeStruct((n_tiles, 8, 128), jnp.float32),
        grid=(n_tiles,),
        in_specs=[
            pl.BlockSpec((INPUT_SIZE, tb), lambda i: (0, i)),
            pl.BlockSpec((LATENT, L * tb), lambda i: (0, i)),
            pl.BlockSpec((SLAB_ROWS, SLAB_COLS), lambda i: (0, 0)),
        ],
        out_specs=pl.BlockSpec((1, 8, 128), lambda i: (i, 0, 0)),
        scratch_shapes=[pltpu.VMEM((LATENT, L * tb), jnp.float32)],
        compiler_params=pltpu.CompilerParams(
            dimension_semantics=("parallel",),
            vmem_limit_bytes=32 * 1024 * 1024),
    )(x2, eps2, slab)

    return jnp.sum(out[:, 0, 0])


def init_params(key):
    """torch.nn.Linear-style init (uniform +-1/sqrt(fan_in)).

    Weights stored as (out, in); biases as (out, 1).  Head layers are split
    into separate mu / logvar weights (equivalent to chunk(2, dim=-1)).
    """
    dims = [
        (8, INPUT_SIZE), (4, 8), (LATENT, 4), (LATENT, 4),      # encoder (+ split head)
        (4, LATENT), (8, 4), (INPUT_SIZE, 8), (INPUT_SIZE, 8),  # decoder (+ split head)
    ]
    params = []
    for (fan_out, fan_in) in dims:
        key, kw, kb = jax.random.split(key, 3)
        bound = 1.0 / jnp.sqrt(jnp.float32(fan_in))
        w = jax.random.uniform(kw, (fan_out, fan_in), jnp.float32, -bound, bound)
        b = jax.random.uniform(kb, (fan_out, 1), jnp.float32, -bound, bound)
        params += [w, b]
    return tuple(params)


def reference_loss(x, eps, params):
    """Pure-JAX reference mirroring the PyTorch forward exactly."""
    (ew1, eb1, ew2, eb2, ew3m, eb3m, ew3v, eb3v,
     dw1, db1, dw2, db2, dw3m, db3m, dw3v, db3v) = params

    def lin(a, w, b):
        return a @ w.T + b[:, 0]

    h = jax.nn.relu(lin(x, ew1, eb1))
    h = jax.nn.relu(lin(h, ew2, eb2))
    mu = lin(h, ew3m, eb3m)                        # (B, lat)
    logvar = lin(h, ew3v, eb3v)
    std = jnp.exp(0.5 * logvar)
    z = mu[None] + std[None] * eps                 # (L, B, lat)  == rsample([L])
    z = jnp.transpose(z, (1, 0, 2))                # (B, L, lat)  == .transpose(0, 1)
    d = jax.nn.relu(lin(z, dw1, db1))
    d = jax.nn.relu(lin(d, dw2, db2))
    rmu = lin(d, dw3m, db3m)                       # (B, L, Din)
    rlogvar = lin(d, dw3v, db3v)
    rstd = jnp.exp(0.5 * rlogvar)
    xb = x[:, None, :]
    logp = -0.5 * ((xb - rmu) / rstd) ** 2 - jnp.log(rstd) - _HALF_LOG_2PI
    log_p = logp.mean(axis=-1).mean(axis=-1)       # (B,)
    kl = (0.5 * (jnp.exp(logvar) + mu ** 2 - 1.0 - logvar)).mean(axis=-1)
    return jnp.sum(kl - log_p)


if __name__ == "__main__":
    key = jax.random.PRNGKey(0)
    k_params, k_x, k_eps = jax.random.split(key, 3)

    B = 512  # -> tb=256, grid=(2,): large lane tiles, even grid for v7x's two TCs
    params = init_params(k_params)
    x = jax.random.normal(k_x, (B, INPUT_SIZE), jnp.float32)
    # Standard-normal draws for the reparameterization trick (torch's
    # dist.rsample([L]) internal noise), passed in explicitly for determinism.
    eps = jax.random.normal(k_eps, (L, B, LATENT), jnp.float32)

    loss = jax.block_until_ready(vae_anomaly_loss(x, eps, params))
    ref = jax.block_until_ready(reference_loss(x, eps, params))

    assert jnp.isfinite(loss), "kernel produced non-finite loss"
    assert jnp.allclose(loss, ref, rtol=1e-4, atol=1e-3), (loss, ref)
    print("KERNEL_OK")
</pallas_src>

<mosaic_0001>
module attributes {stable_mosaic.version = 11 : i64} {
  func.func @_vae_loss_kernel(%arg0: i32, %arg1: memref<8x256xf32, #tpu.memory_space<vmem>>, %arg2: memref<2x2560xf32, #tpu.memory_space<vmem>>, %arg3: memref<64x128xf32, #tpu.memory_space<vmem>>, %arg4: memref<1x8x128xf32, #tpu.memory_space<vmem>>, %arg5: memref<2x2560xf32, #tpu.memory_space<vmem>>) attributes {dimension_semantics = [#tpu.dimension_semantics<parallel>], iteration_bounds = array<i64: 2>, scalar_prefetch = 0 : i64, scratch_operands = 1 : i64, tpu.core_type = #tpu.core_type<tc>, window_params = [{transform_indices = @transform_0, window_bounds = array<i64: 8, 256>}, {transform_indices = @transform_1, window_bounds = array<i64: 2, 2560>}, {pipeline_mode = #tpu.pipeline_mode<synchronous>, transform_indices = @transform_2, window_bounds = array<i64: 64, 128>}, {transform_indices = @transform_3, window_bounds = array<i64: 1, 8, 128>}]} {
    %c0 = arith.constant 0 : index
    %c0_0 = arith.constant 0 : index
    %0 = vector.load %arg1[%c0, %c0_0] : memref<8x256xf32, #tpu.memory_space<vmem>>, vector<8x256xf32>
    %c0_1 = arith.constant 0 : index
    %c0_2 = arith.constant 0 : index
    %1 = vector.load %arg3[%c0_1, %c0_2] : memref<64x128xf32, #tpu.memory_space<vmem>>, vector<8x8xf32>
    %c0_3 = arith.constant 0 : index
    %c8 = arith.constant 8 : index
    %2 = vector.load %arg3[%c0_3, %c8] : memref<64x128xf32, #tpu.memory_space<vmem>>, vector<8x1xf32>
    %c8_4 = arith.constant 8 : index
    %c0_5 = arith.constant 0 : index
    %3 = vector.load %arg3[%c8_4, %c0_5] : memref<64x128xf32, #tpu.memory_space<vmem>>, vector<4x8xf32>
    %c8_6 = arith.constant 8 : index
    %c8_7 = arith.constant 8 : index
    %4 = vector.load %arg3[%c8_6, %c8_7] : memref<64x128xf32, #tpu.memory_space<vmem>>, vector<4x1xf32>
    %c16 = arith.constant 16 : index
    %c0_8 = arith.constant 0 : index
    %5 = vector.load %arg3[%c16, %c0_8] : memref<64x128xf32, #tpu.memory_space<vmem>>, vector<2x4xf32>
    %c16_9 = arith.constant 16 : index
    %c4 = arith.constant 4 : index
    %6 = vector.load %arg3[%c16_9, %c4] : memref<64x128xf32, #tpu.memory_space<vmem>>, vector<2x1xf32>
    %c24 = arith.constant 24 : index
    %c0_10 = arith.constant 0 : index
    %7 = vector.load %arg3[%c24, %c0_10] : memref<64x128xf32, #tpu.memory_space<vmem>>, vector<2x4xf32>
    %c24_11 = arith.constant 24 : index
    %c4_12 = arith.constant 4 : index
    %8 = vector.load %arg3[%c24_11, %c4_12] : memref<64x128xf32, #tpu.memory_space<vmem>>, vector<2x1xf32>
    %c32 = arith.constant 32 : index
    %c0_13 = arith.constant 0 : index
    %9 = vector.load %arg3[%c32, %c0_13] : memref<64x128xf32, #tpu.memory_space<vmem>>, vector<4x2xf32>
    %c32_14 = arith.constant 32 : index
    %c2 = arith.constant 2 : index
    %10 = vector.load %arg3[%c32_14, %c2] : memref<64x128xf32, #tpu.memory_space<vmem>>, vector<4x1xf32>
    %c40 = arith.constant 40 : index
    %c0_15 = arith.constant 0 : index
    %11 = vector.load %arg3[%c40, %c0_15] : memref<64x128xf32, #tpu.memory_space<vmem>>, vector<8x4xf32>
    %c40_16 = arith.constant 40 : index
    %c4_17 = arith.constant 4 : index
    %12 = vector.load %arg3[%c40_16, %c4_17] : memref<64x128xf32, #tpu.memory_space<vmem>>, vector<8x1xf32>
    %c48 = arith.constant 48 : index
    %c0_18 = arith.constant 0 : index
    %13 = vector.load %arg3[%c48, %c0_18] : memref<64x128xf32, #tpu.memory_space<vmem>>, vector<16x8xf32>
    %c48_19 = arith.constant 48 : index
    %c8_20 = arith.constant 8 : index
    %14 = vector.load %arg3[%c48_19, %c8_20] : memref<64x128xf32, #tpu.memory_space<vmem>>, vector<16x1xf32>
    %cst = arith.constant dense<0.000000e+00> : vector<8x256xf32>
    %15 = tpu.matmul %1, %0, %cst {dimension_numbers = #tpu.dot_dimension_numbers<[1], [0], [0], [1], [0, 0, 1, 1], [], []>} : vector<8x8xf32>, vector<8x256xf32>, vector<8x256xf32> -> vector<8x256xf32>
    %16 = vector.broadcast %2 : vector<8x1xf32> to vector<8x256xf32>
    %17 = arith.addf %15, %16 : vector<8x256xf32>
    %cst_21 = arith.constant 0.000000e+00 : f32
    %18 = vector.broadcast %cst_21 : f32 to vector<8x256xf32>
    %19 = arith.maximumf %17, %18 : vector<8x256xf32>
    %cst_22 = arith.constant dense<0.000000e+00> : vector<4x256xf32>
    %20 = tpu.matmul %3, %19, %cst_22 {dimension_numbers = #tpu.dot_dimension_numbers<[1], [0], [0], [1], [0, 0, 1, 1], [], []>} : vector<4x8xf32>, vector<8x256xf32>, vector<4x256xf32> -> vector<4x256xf32>
    %21 = vector.broadcast %4 : vector<4x1xf32> to vector<4x256xf32>
    %22 = arith.addf %20, %21 : vector<4x256xf32>
    %cst_23 = arith.constant 0.000000e+00 : f32
    %23 = vector.broadcast %cst_23 : f32 to vector<4x256xf32>
    %24 = arith.maximumf %22, %23 : vector<4x256xf32>
    %cst_24 = arith.constant dense<0.000000e+00> : vector<2x256xf32>
    %25 = tpu.matmul %5, %24, %cst_24 {dimension_numbers = #tpu.dot_dimension_numbers<[1], [0], [0], [1], [0, 0, 1, 1], [], []>} : vector<2x4xf32>, vector<4x256xf32>, vector<2x256xf32> -> vector<2x256xf32>
    %26 = vector.broadcast %6 : vector<2x1xf32> to vector<2x256xf32>
    %27 = arith.addf %25, %26 : vector<2x256xf32>
    %cst_25 = arith.constant dense<0.000000e+00> : vector<2x256xf32>
    %28 = tpu.matmul %7, %24, %cst_25 {dimension_numbers = #tpu.dot_dimension_numbers<[1], [0], [0], [1], [0, 0, 1, 1], [], []>} : vector<2x4xf32>, vector<4x256xf32>, vector<2x256xf32> -> vector<2x256xf32>
    %29 = vector.broadcast %8 : vector<2x1xf32> to vector<2x256xf32>
    %30 = arith.addf %28, %29 : vector<2x256xf32>
    %cst_26 = arith.constant 5.000000e-01 : f32
    %31 = vector.broadcast %cst_26 : f32 to vector<2x256xf32>
    %32 = arith.mulf %31, %30 : vector<2x256xf32>
    %33 = math.exp %32 : vector<2x256xf32>
    %c0_27 = arith.constant 0 : index
    %c0_28 = arith.constant 0 : index
    %34 = vector.load %arg2[%c0_27, %c0_28] : memref<2x2560xf32, #tpu.memory_space<vmem>>, vector<2x256xf32>
    %35 = arith.mulf %33, %34 : vector<2x256xf32>
    %36 = arith.addf %27, %35 : vector<2x256xf32>
    %c0_29 = arith.constant 0 : index
    %c0_30 = arith.constant 0 : index
    %37 = vector.load %arg5[%c0_29, %c0_30] : memref<2x2560xf32, #tpu.memory_space<vmem>>, vector<2x256xf32>
    tpu.vector_store %arg5[%c0_29, %c0_30], %36 {strides = array<i32>} : memref<2x2560xf32, #tpu.memory_space<vmem>>, vector<2x256xf32>,
    %c0_31 = arith.constant 0 : index
    %c256 = arith.constant 256 : index
    %38 = vector.load %arg2[%c0_31, %c256] : memref<2x2560xf32, #tpu.memory_space<vmem>>, vector<2x256xf32>
    %39 = arith.mulf %33, %38 : vector<2x256xf32>
    %40 = arith.addf %27, %39 : vector<2x256xf32>
    %c0_32 = arith.constant 0 : index
    %c256_33 = arith.constant 256 : index
    %41 = vector.load %arg5[%c0_32, %c256_33] : memref<2x2560xf32, #tpu.memory_space<vmem>>, vector<2x256xf32>
    tpu.vector_store %arg5[%c0_32, %c256_33], %40 {strides = array<i32>} : memref<2x2560xf32, #tpu.memory_space<vmem>>, vector<2x256xf32>,
    %c0_34 = arith.constant 0 : index
    %c512 = arith.constant 512 : index
    %42 = vector.load %arg2[%c0_34, %c512] : memref<2x2560xf32, #tpu.memory_space<vmem>>, vector<2x256xf32>
    %43 = arith.mulf %33, %42 : vector<2x256xf32>
    %44 = arith.addf %27, %43 : vector<2x256xf32>
    %c0_35 = arith.constant 0 : index
    %c512_36 = arith.constant 512 : index
    %45 = vector.load %arg5[%c0_35, %c512_36] : memref<2x2560xf32, #tpu.memory_space<vmem>>, vector<2x256xf32>
    tpu.vector_store %arg5[%c0_35, %c512_36], %44 {strides = array<i32>} : memref<2x2560xf32, #tpu.memory_space<vmem>>, vector<2x256xf32>,
    %c0_37 = arith.constant 0 : index
    %c768 = arith.constant 768 : index
    %46 = vector.load %arg2[%c0_37, %c768] : memref<2x2560xf32, #tpu.memory_space<vmem>>, vector<2x256xf32>
    %47 = arith.mulf %33, %46 : vector<2x256xf32>
    %48 = arith.addf %27, %47 : vector<2x256xf32>
    %c0_38 = arith.constant 0 : index
    %c768_39 = arith.constant 768 : index
    %49 = vector.load %arg5[%c0_38, %c768_39] : memref<2x2560xf32, #tpu.memory_space<vmem>>, vector<2x256xf32>
    tpu.vector_store %arg5[%c0_38, %c768_39], %48 {strides = array<i32>} : memref<2x2560xf32, #tpu.memory_space<vmem>>, vector<2x256xf32>,
    %c0_40 = arith.constant 0 : index
    %c1024 = arith.constant 1024 : index
    %50 = vector.load %arg2[%c0_40, %c1024] : memref<2x2560xf32, #tpu.memory_space<vmem>>, vector<2x256xf32>
    %51 = arith.mulf %33, %50 : vector<2x256xf32>
    %52 = arith.addf %27, %51 : vector<2x256xf32>
    %c0_41 = arith.constant 0 : index
    %c1024_42 = arith.constant 1024 : index
    %53 = vector.load %arg5[%c0_41, %c1024_42] : memref<2x2560xf32, #tpu.memory_space<vmem>>, vector<2x256xf32>
    tpu.vector_store %arg5[%c0_41, %c1024_42], %52 {strides = array<i32>} : memref<2x2560xf32, #tpu.memory_space<vmem>>, vector<2x256xf32>,
    %c0_43 = arith.constant 0 : index
    %c1280 = arith.constant 1280 : index
    %54 = vector.load %arg2[%c0_43, %c1280] : memref<2x2560xf32, #tpu.memory_space<vmem>>, vector<2x256xf32>
    %55 = arith.mulf %33, %54 : vector<2x256xf32>
    %56 = arith.addf %27, %55 : vector<2x256xf32>
    %c0_44 = arith.constant 0 : index
    %c1280_45 = arith.constant 1280 : index
    %57 = vector.load %arg5[%c0_44, %c1280_45] : memref<2x2560xf32, #tpu.memory_space<vmem>>, vector<2x256xf32>
    tpu.vector_store %arg5[%c0_44, %c1280_45], %56 {strides = array<i32>} : memref<2x2560xf32, #tpu.memory_space<vmem>>, vector<2x256xf32>,
    %c0_46 = arith.constant 0 : index
    %c1536 = arith.constant 1536 : index
    %58 = vector.load %arg2[%c0_46, %c1536] : memref<2x2560xf32, #tpu.memory_space<vmem>>, vector<2x256xf32>
    %59 = arith.mulf %33, %58 : vector<2x256xf32>
    %60 = arith.addf %27, %59 : vector<2x256xf32>
    %c0_47 = arith.constant 0 : index
    %c1536_48 = arith.constant 1536 : index
    %61 = vector.load %arg5[%c0_47, %c1536_48] : memref<2x2560xf32, #tpu.memory_space<vmem>>, vector<2x256xf32>
    tpu.vector_store %arg5[%c0_47, %c1536_48], %60 {strides = array<i32>} : memref<2x2560xf32, #tpu.memory_space<vmem>>, vector<2x256xf32>,
    %c0_49 = arith.constant 0 : index
    %c1792 = arith.constant 1792 : index
    %62 = vector.load %arg2[%c0_49, %c1792] : memref<2x2560xf32, #tpu.memory_space<vmem>>, vector<2x256xf32>
    %63 = arith.mulf %33, %62 : vector<2x256xf32>
    %64 = arith.addf %27, %63 : vector<2x256xf32>
    %c0_50 = arith.constant 0 : index
    %c1792_51 = arith.constant 1792 : index
    %65 = vector.load %arg5[%c0_50, %c1792_51] : memref<2x2560xf32, #tpu.memory_space<vmem>>, vector<2x256xf32>
    tpu.vector_store %arg5[%c0_50, %c1792_51], %64 {strides = array<i32>} : memref<2x2560xf32, #tpu.memory_space<vmem>>, vector<2x256xf32>,
    %c0_52 = arith.constant 0 : index
    %c2048 = arith.constant 2048 : index
    %66 = vector.load %arg2[%c0_52, %c2048] : memref<2x2560xf32, #tpu.memory_space<vmem>>, vector<2x256xf32>
    %67 = arith.mulf %33, %66 : vector<2x256xf32>
    %68 = arith.addf %27, %67 : vector<2x256xf32>
    %c0_53 = arith.constant 0 : index
    %c2048_54 = arith.constant 2048 : index
    %69 = vector.load %arg5[%c0_53, %c2048_54] : memref<2x2560xf32, #tpu.memory_space<vmem>>, vector<2x256xf32>
    tpu.vector_store %arg5[%c0_53, %c2048_54], %68 {strides = array<i32>} : memref<2x2560xf32, #tpu.memory_space<vmem>>, vector<2x256xf32>,
    %c0_55 = arith.constant 0 : index
    %c2304 = arith.constant 2304 : index
    %70 = vector.load %arg2[%c0_55, %c2304] : memref<2x2560xf32, #tpu.memory_space<vmem>>, vector<2x256xf32>
    %71 = arith.mulf %33, %70 : vector<2x256xf32>
    %72 = arith.addf %27, %71 : vector<2x256xf32>
    %c0_56 = arith.constant 0 : index
    %c2304_57 = arith.constant 2304 : index
    %73 = vector.load %arg5[%c0_56, %c2304_57] : memref<2x2560xf32, #tpu.memory_space<vmem>>, vector<2x256xf32>
    tpu.vector_store %arg5[%c0_56, %c2304_57], %72 {strides = array<i32>} : memref<2x2560xf32, #tpu.memory_space<vmem>>, vector<2x256xf32>,
    %c0_58 = arith.constant 0 : index
    %c0_59 = arith.constant 0 : index
    %74 = vector.load %arg5[%c0_58, %c0_59] : memref<2x2560xf32, #tpu.memory_space<vmem>>, vector<2x2560xf32>
    %cst_60 = arith.constant dense<0.000000e+00> : vector<4x2560xf32>
    %75 = tpu.matmul %9, %74, %cst_60 {dimension_numbers = #tpu.dot_dimension_numbers<[1], [0], [0], [1], [0, 0, 1, 1], [], []>} : vector<4x2xf32>, vector<2x2560xf32>, vector<4x2560xf32> -> vector<4x2560xf32>
    %76 = vector.broadcast %10 : vector<4x1xf32> to vector<4x2560xf32>
    %77 = arith.addf %75, %76 : vector<4x2560xf32>
    %cst_61 = arith.constant 0.000000e+00 : f32
    %78 = vector.broadcast %cst_61 : f32 to vector<4x2560xf32>
    %79 = arith.maximumf %77, %78 : vector<4x2560xf32>
    %cst_62 = arith.constant dense<0.000000e+00> : vector<8x2560xf32>
    %80 = tpu.matmul %11, %79, %cst_62 {dimension_numbers = #tpu.dot_dimension_numbers<[1], [0], [0], [1], [0, 0, 1, 1], [], []>} : vector<8x4xf32>, vector<4x2560xf32>, vector<8x2560xf32> -> vector<8x2560xf32>
    %81 = vector.broadcast %12 : vector<8x1xf32> to vector<8x2560xf32>
    %82 = arith.addf %80, %81 : vector<8x2560xf32>
    %cst_63 = arith.constant 0.000000e+00 : f32
    %83 = vector.broadcast %cst_63 : f32 to vector<8x2560xf32>
    %84 = arith.maximumf %82, %83 : vector<8x2560xf32>
    %cst_64 = arith.constant dense<0.000000e+00> : vector<16x2560xf32>
    %85 = tpu.matmul %13, %84, %cst_64 {dimension_numbers = #tpu.dot_dimension_numbers<[1], [0], [0], [1], [0, 0, 1, 1], [], []>} : vector<16x8xf32>, vector<8x2560xf32>, vector<16x2560xf32> -> vector<16x2560xf32>
    %86 = vector.broadcast %14 : vector<16x1xf32> to vector<16x2560xf32>
    %87 = arith.addf %85, %86 : vector<16x2560xf32>
    %cst_65 = arith.constant 0.000000e+00 : f32
    %88 = vector.broadcast %cst_65 : f32 to vector<8x256xf32>
    %89 = vector.extract_strided_slice %87 {offsets = [0, 0], sizes = [8, 256], strides = [1, 1]} : vector<16x2560xf32> to vector<8x256xf32>
    %90 = vector.extract_strided_slice %87 {offsets = [8, 0], sizes = [8, 256], strides = [1, 1]} : vector<16x2560xf32> to vector<8x256xf32>
    %91 = arith.subf %0, %89 : vector<8x256xf32>
    %92 = arith.mulf %91, %91 : vector<8x256xf32>
    %cst_66 = arith.constant 0.000000e+00 : f32
    %93 = vector.broadcast %cst_66 : f32 to vector<8x256xf32>
    %94 = arith.subf %93, %90 : vector<8x256xf32>
    %95 = math.exp %94 : vector<8x256xf32>
    %96 = arith.mulf %92, %95 : vector<8x256xf32>
    %97 = arith.addf %96, %90 : vector<8x256xf32>
    %98 = arith.addf %88, %97 : vector<8x256xf32>
    %99 = vector.extract_strided_slice %87 {offsets = [0, 256], sizes = [8, 256], strides = [1, 1]} : vector<16x2560xf32> to vector<8x256xf32>
    %100 = vector.extract_strided_slice %87 {offsets = [8, 256], sizes = [8, 256], strides = [1, 1]} : vector<16x2560xf32> to vector<8x256xf32>
    %101 = arith.subf %0, %99 : vector<8x256xf32>
    %102 = arith.mulf %101, %101 : vector<8x256xf32>
    %cst_67 = arith.constant 0.000000e+00 : f32
    %103 = vector.broadcast %cst_67 : f32 to vector<8x256xf32>
    %104 = arith.subf %103, %100 : vector<8x256xf32>
    %105 = math.exp %104 : vector<8x256xf32>
    %106 = arith.mulf %102, %105 : vector<8x256xf32>
    %107 = arith.addf %106, %100 : vector<8x256xf32>
    %108 = arith.addf %98, %107 : vector<8x256xf32>
    %109 = vector.extract_strided_slice %87 {offsets = [0, 512], sizes = [8, 256], strides = [1, 1]} : vector<16x2560xf32> to vector<8x256xf32>
    %110 = vector.extract_strided_slice %87 {offsets = [8, 512], sizes = [8, 256], strides = [1, 1]} : vector<16x2560xf32> to vector<8x256xf32>
    %111 = arith.subf %0, %109 : vector<8x256xf32>
    %112 = arith.mulf %111, %111 : vector<8x256xf32>
    %cst_68 = arith.constant 0.000000e+00 : f32
    %113 = vector.broadcast %cst_68 : f32 to vector<8x256xf32>
    %114 = arith.subf %113, %110 : vector<8x256xf32>
    %115 = math.exp %114 : vector<8x256xf32>
    %116 = arith.mulf %112, %115 : vector<8x256xf32>
    %117 = arith.addf %116, %110 : vector<8x256xf32>
    %118 = arith.addf %108, %117 : vector<8x256xf32>
    %119 = vector.extract_strided_slice %87 {offsets = [0, 768], sizes = [8, 256], strides = [1, 1]} : vector<16x2560xf32> to vector<8x256xf32>
    %120 = vector.extract_strided_slice %87 {offsets = [8, 768], sizes = [8, 256], strides = [1, 1]} : vector<16x2560xf32> to vector<8x256xf32>
    %121 = arith.subf %0, %119 : vector<8x256xf32>
    %122 = arith.mulf %121, %121 : vector<8x256xf32>
    %cst_69 = arith.constant 0.000000e+00 : f32
    %123 = vector.broadcast %cst_69 : f32 to vector<8x256xf32>
    %124 = arith.subf %123, %120 : vector<8x256xf32>
    %125 = math.exp %124 : vector<8x256xf32>
    %126 = arith.mulf %122, %125 : vector<8x256xf32>
    %127 = arith.addf %126, %120 : vector<8x256xf32>
    %128 = arith.addf %118, %127 : vector<8x256xf32>
    %129 = vector.extract_strided_slice %87 {offsets = [0, 1024], sizes = [8, 256], strides = [1, 1]} : vector<16x2560xf32> to vector<8x256xf32>
    %130 = vector.extract_strided_slice %87 {offsets = [8, 1024], sizes = [8, 256], strides = [1, 1]} : vector<16x2560xf32> to vector<8x256xf32>
    %131 = arith.subf %0, %129 : vector<8x256xf32>
    %132 = arith.mulf %131, %131 : vector<8x256xf32>
    %cst_70 = arith.constant 0.000000e+00 : f32
    %133 = vector.broadcast %cst_70 : f32 to vector<8x256xf32>
    %134 = arith.subf %133, %130 : vector<8x256xf32>
    %135 = math.exp %134 : vector<8x256xf32>
    %136 = arith.mulf %132, %135 : vector<8x256xf32>
    %137 = arith.addf %136, %130 : vector<8x256xf32>
    %138 = arith.addf %128, %137 : vector<8x256xf32>
    %139 = vector.extract_strided_slice %87 {offsets = [0, 1280], sizes = [8, 256], strides = [1, 1]} : vector<16x2560xf32> to vector<8x256xf32>
    %140 = vector.extract_strided_slice %87 {offsets = [8, 1280], sizes = [8, 256], strides = [1, 1]} : vector<16x2560xf32> to vector<8x256xf32>
    %141 = arith.subf %0, %139 : vector<8x256xf32>
    %142 = arith.mulf %141, %141 : vector<8x256xf32>
    %cst_71 = arith.constant 0.000000e+00 : f32
    %143 = vector.broadcast %cst_71 : f32 to vector<8x256xf32>
    %144 = arith.subf %143, %140 : vector<8x256xf32>
    %145 = math.exp %144 : vector<8x256xf32>
    %146 = arith.mulf %142, %145 : vector<8x256xf32>
    %147 = arith.addf %146, %140 : vector<8x256xf32>
    %148 = arith.addf %138, %147 : vector<8x256xf32>
    %149 = vector.extract_strided_slice %87 {offsets = [0, 1536], sizes = [8, 256], strides = [1, 1]} : vector<16x2560xf32> to vector<8x256xf32>
    %150 = vector.extract_strided_slice %87 {offsets = [8, 1536], sizes = [8, 256], strides = [1, 1]} : vector<16x2560xf32> to vector<8x256xf32>
    %151 = arith.subf %0, %149 : vector<8x256xf32>
    %152 = arith.mulf %151, %151 : vector<8x256xf32>
    %cst_72 = arith.constant 0.000000e+00 : f32
    %153 = vector.broadcast %cst_72 : f32 to vector<8x256xf32>
    %154 = arith.subf %153, %150 : vector<8x256xf32>
    %155 = math.exp %154 : vector<8x256xf32>
    %156 = arith.mulf %152, %155 : vector<8x256xf32>
    %157 = arith.addf %156, %150 : vector<8x256xf32>
    %158 = arith.addf %148, %157 : vector<8x256xf32>
    %159 = vector.extract_strided_slice %87 {offsets = [0, 1792], sizes = [8, 256], strides = [1, 1]} : vector<16x2560xf32> to vector<8x256xf32>
    %160 = vector.extract_strided_slice %87 {offsets = [8, 1792], sizes = [8, 256], strides = [1, 1]} : vector<16x2560xf32> to vector<8x256xf32>
    %161 = arith.subf %0, %159 : vector<8x256xf32>
    %162 = arith.mulf %161, %161 : vector<8x256xf32>
    %cst_73 = arith.constant 0.000000e+00 : f32
    %163 = vector.broadcast %cst_73 : f32 to vector<8x256xf32>
    %164 = arith.subf %163, %160 : vector<8x256xf32>
    %165 = math.exp %164 : vector<8x256xf32>
    %166 = arith.mulf %162, %165 : vector<8x256xf32>
    %167 = arith.addf %166, %160 : vector<8x256xf32>
    %168 = arith.addf %158, %167 : vector<8x256xf32>
    %169 = vector.extract_strided_slice %87 {offsets = [0, 2048], sizes = [8, 256], strides = [1, 1]} : vector<16x2560xf32> to vector<8x256xf32>
    %170 = vector.extract_strided_slice %87 {offsets = [8, 2048], sizes = [8, 256], strides = [1, 1]} : vector<16x2560xf32> to vector<8x256xf32>
    %171 = arith.subf %0, %169 : vector<8x256xf32>
    %172 = arith.mulf %171, %171 : vector<8x256xf32>
    %cst_74 = arith.constant 0.000000e+00 : f32
    %173 = vector.broadcast %cst_74 : f32 to vector<8x256xf32>
    %174 = arith.subf %173, %170 : vector<8x256xf32>
    %175 = math.exp %174 : vector<8x256xf32>
    %176 = arith.mulf %172, %175 : vector<8x256xf32>
    %177 = arith.addf %176, %170 : vector<8x256xf32>
    %178 = arith.addf %168, %177 : vector<8x256xf32>
    %179 = vector.extract_strided_slice %87 {offsets = [0, 2304], sizes = [8, 256], strides = [1, 1]} : vector<16x2560xf32> to vector<8x256xf32>
    %180 = vector.extract_strided_slice %87 {offsets = [8, 2304], sizes = [8, 256], strides = [1, 1]} : vector<16x2560xf32> to vector<8x256xf32>
    %181 = arith.subf %0, %179 : vector<8x256xf32>
    %182 = arith.mulf %181, %181 : vector<8x256xf32>
    %cst_75 = arith.constant 0.000000e+00 : f32
    %183 = vector.broadcast %cst_75 : f32 to vector<8x256xf32>
    %184 = arith.subf %183, %180 : vector<8x256xf32>
    %185 = math.exp %184 : vector<8x256xf32>
    %186 = arith.mulf %182, %185 : vector<8x256xf32>
    %187 = arith.addf %186, %180 : vector<8x256xf32>
    %188 = arith.addf %178, %187 : vector<8x256xf32>
    %189 = arith.mulf %33, %33 : vector<2x256xf32>
    %190 = arith.mulf %27, %27 : vector<2x256xf32>
    %191 = arith.addf %189, %190 : vector<2x256xf32>
    %cst_76 = arith.constant 1.000000e+00 : f32
    %192 = vector.broadcast %cst_76 : f32 to vector<2x256xf32>
    %193 = arith.subf %191, %192 : vector<2x256xf32>
    %194 = arith.subf %193, %30 : vector<2x256xf32>
    %cst_77 = arith.constant 5.000000e-01 : f32
    %195 = vector.broadcast %cst_77 : f32 to vector<2x256xf32>
    %196 = arith.mulf %195, %194 : vector<2x256xf32>
    %197 = vector.shape_cast %196 : vector<2x256xf32> to vector<1x2x256xf32>
    %cst_78 = arith.constant dense<0.000000e+00> : vector<1xf32>
    %198 = vector.multi_reduction <add>, %197, %cst_78 [1, 2] : vector<1x2x256xf32> to vector<1xf32>
    %199 = vector.shape_cast %198 : vector<1xf32> to vector<1x1x1xf32>
    %200 = vector.extract %199[0, 0, 0] : f32 from vector<1x1x1xf32>
    %cst_79 = arith.constant 2.000000e+00 : f32
    %201 = arith.divf %200, %cst_79 : f32
    %202 = vector.shape_cast %188 : vector<8x256xf32> to vector<1x8x256xf32>
    %cst_80 = arith.constant dense<0.000000e+00> : vector<1xf32>
    %203 = vector.multi_reduction <add>, %202, %cst_80 [1, 2] : vector<1x8x256xf32> to vector<1xf32>
    %204 = vector.shape_cast %203 : vector<1xf32> to vector<1x1x1xf32>
    %205 = vector.extract %204[0, 0, 0] : f32 from vector<1x1x1xf32>
    %cst_81 = arith.constant 5.000000e-01 : f32
    %206 = arith.mulf %cst_81, %205 : f32
    %cst_82 = arith.constant 8.000000e+01 : f32
    %207 = arith.divf %206, %cst_82 : f32
    %208 = arith.addf %201, %207 : f32
    %cst_83 = arith.constant 235.24826 : f32
    %209 = arith.addf %208, %cst_83 : f32
    %210 = vector.broadcast %209 : f32 to vector<1x8x128xf32>
    %c0_84 = arith.constant 0 : index
    %c0_85 = arith.constant 0 : index
    %c0_86 = arith.constant 0 : index
    %211 = vector.load %arg4[%c0_84, %c0_85, %c0_86] : memref<1x8x128xf32, #tpu.memory_space<vmem>>, vector<1x8x128xf32>
    tpu.vector_store %arg4[%c0_84, %c0_85, %c0_86], %210 {strides = array<i32>} : memref<1x8x128xf32, #tpu.memory_space<vmem>>, vector<1x8x128xf32>,
    return
  }
  func.func @transform_0(%arg0: i32) -> (i32, i32) {
    %c0_i32 = arith.constant 0 : i32
    %c0_i32_0 = arith.constant 0 : i32
    return %c0_i32, %arg0 : i32, i32
  }
  func.func @transform_1(%arg0: i32) -> (i32, i32) {
    %c0_i32 = arith.constant 0 : i32
    %c0_i32_0 = arith.constant 0 : i32
    return %c0_i32, %arg0 : i32, i32
  }
  func.func @transform_2(%arg0: i32) -> (i32, i32) {
    %c0_i32 = arith.constant 0 : i32
    %c0_i32_0 = arith.constant 0 : i32
    %c0_i32_1 = arith.constant 0 : i32
    return %c0_i32, %c0_i32_0 : i32, i32
  }
  func.func @transform_3(%arg0: i32) -> (i32, i32, i32) {
    %c0_i32 = arith.constant 0 : i32
    %c0_i32_0 = arith.constant 0 : i32
    %c0_i32_1 = arith.constant 0 : i32
    return %arg0, %c0_i32, %c0_i32_0 : i32, i32, i32
  }
}

</mosaic_0001>

<llo_original>
// kernel: tpu_custom_call.1
$region0: #{tpu_custom_call.1}
  #allocation0 [shape = 'u32[]', space=smem, size = 0x4, offset = 0x4, fixed_abs, tag = 'smem constant byte address 0x4 - core index']
  #allocation1 [shape = 'u32[72,128]{1,0:T(1,128)}', space=vmem, size = 0x9000, scoped, tag = 'internal scratch']
  #allocation2 [shape = 'f32[2,2560]{1,0:T(2,128)}', space=vmem, size = 0x5000, scoped, tag = 'scratch operand']
  %s0 = inlined_call_operand.hbm [shape: f32[8,512], index: 0, kind: input, shape index: {}]
  %s1 = inlined_call_operand.hbm [shape: f32[2,5120], index: 1, kind: input, shape index: {}]
  %s2 = inlined_call_operand.hbm [shape: f32[64,128], index: 2, kind: input, shape index: {}]
  %s3 = inlined_call_operand.hbm [shape: f32[2,8,128], index: 3, kind: output, shape index: {}]
  %s4 = sld [smem:[#allocation0]]
  $region57: #{tpu_custom_call.1} parent=0
    _
  %s6 = ssub.s32 1, %s4
  %s7 = scalar_select 0, %s6, %s4
  $region1: #{tpu_custom_call.1} parent=0
    #allocation3 [shape = 'u8[16384]{0}', space=vmem, size = 0x4000, scoped, tag = 'input window, operand 0']
    #allocation4 [shape = 's32[2]{0}', space=sflag, size = 0x8, scoped, tag = 'scoped memory for tpu_custom_call.1']
    #allocation5 [shape = 's32[2]{0}', space=sflag, size = 0x8, scoped, tag = 'scoped memory for tpu_custom_call.1']
    #allocation6 [shape = 'u8[40960]{0}', space=vmem, size = 0xa000, scoped, tag = 'input window, operand 1']
    #allocation7 [shape = 's32[2]{0}', space=sflag, size = 0x8, scoped, tag = 'scoped memory for tpu_custom_call.1']
    #allocation8 [shape = 'u8[32768]{0}', space=vmem, size = 0x8000, scoped, tag = 'input window, operand 2, single buffered']
    #allocation9 [shape = 'u8[8192]{0}', space=vmem, size = 0x2000, scoped, tag = 'output window, operand 0']
    %8 = vsyncpa [#allocation4], 0
    %s9 = scalar_lea.sflag [#allocation4], 1
    %10 = vsyncpa %s9, 0
    %11 = vsyncpa [#allocation7], 0
    %s12 = scalar_lea.sflag [#allocation7], 1
    %13 = vsyncpa %s12, 0
    %14 = vsyncpa [#allocation5], 0
    %s15 = scalar_lea.sflag [#allocation5], 1
    %16 = vsyncpa %s15, 0
    loop: start=0, step=1, limit=4
    $region2: #{tpu_custom_call.1} parent=1 // loop_pre_header
      _
    $region3: #{tpu_custom_call.1} parent=1 // loop_header
      %s18 = sphi 0, %s22
      %p19 = scmp.ge.s32.totalorder %s18, 4
      %s28 = sphi 0, %s30
      %s31 = sphi 0, %s28
      %s32 = sphi 0, %s31
      %s48 = sphi 0, %s32
      %s54 = sphi 0, %s56
      %s57 = sphi 0, %s54
      %s58 = sphi 0, %s57
      %s74 = sphi 0, %s58
      %s78 = sphi 0, %s78
      %s80 = sphi 0, %s78
      %s81 = sphi 0, %s80
      %s95 = sphi 0, %s81
      %s101 = sphi 0, %s103
      %s104 = sphi 0, %s101
      %s105 = sphi 0, %s104
      %s121 = sphi 0, %s105
    $region4: #{tpu_custom_call.1} parent=1 // loop_header_branch
      %21 = sbr.rel (%p19) target = $region8
    $region5: #{tpu_custom_call.1} parent=1 // loop_body
      %s23 = ssub.s32 %s18, 1
      %s24 = ssub.s32 %s18, 2
      %s25 = sadd.s32 %s18, 1
      %s26 = ssub.s32 %s18, %s25
      %p27 = scmp.eq.s32.totalorder %s26, 0
      %s29 = sadd.s32 %s28, 1
      %s30 = scalar_select %p27, %s28, %s29
      %p33 = pneg %p27
      %p34 = scmp.eq.s32.totalorder %s18, 1
      %p35 = por %p33, %p34
      %p36 = scmp.ne.s32.totalorder %s28, %s31
      %p37 = scmp.eq.s32.totalorder %s18, 0
      %p38 = por %p36, %p37
      %p39 = scmp.ne.s32.totalorder %s28, %s31
      %p40 = scmp.eq.s32.totalorder %s23, 1
      %p41 = por %p39, %p40
      %p42 = scmp.ne.s32.totalorder %s31, %s32
      %p43 = scmp.eq.s32.totalorder %s23, 0
      %p44 = por %p42, %p43
      %p45 = scmp.ne.s32.totalorder %s31, %s32
      %p46 = scmp.eq.s32.totalorder %s24, 1
      %p47 = por %p45, %p46
      %p49 = scmp.ne.s32.totalorder %s32, %s48
      %p50 = scmp.eq.s32.totalorder %s24, 0
      %p51 = por %p49, %p50
      %s52 = ssub.s32 %s18, %s25
      %p53 = scmp.eq.s32.totalorder %s52, 0
      %s55 = sadd.s32 %s54, 1
      %s56 = scalar_select %p53, %s54, %s55
      %p59 = pneg %p53
      %p60 = scmp.eq.s32.totalorder %s18, 1
      %p61 = por %p59, %p60
      %p62 = scmp.ne.s32.totalorder %s54, %s57
      %p63 = scmp.eq.s32.totalorder %s18, 0
      %p64 = por %p62, %p63
      %p65 = scmp.ne.s32.totalorder %s54, %s57
      %p66 = scmp.eq.s32.totalorder %s23, 1
      %p67 = por %p65, %p66
      %p68 = scmp.ne.s32.totalorder %s57, %s58
      %p69 = scmp.eq.s32.totalorder %s23, 0
      %p70 = por %p68, %p69
      %p71 = scmp.ne.s32.totalorder %s57, %s58
      %p72 = scmp.eq.s32.totalorder %s24, 1
      %p73 = por %p71, %p72
      %p75 = scmp.ne.s32.totalorder %s58, %s74
      %p76 = scmp.eq.s32.totalorder %s24, 0
      %p77 = por %p75, %p76
      %s79 = sadd.s32 %s78, 1
      %p82 = scmp.eq.s32.totalorder %s18, 1
      %p83 = scmp.ne.s32.totalorder %s78, %s80
      %p84 = scmp.eq.s32.totalorder %s18, 0
      %p85 = por %p83, %p84
      %p86 = scmp.ne.s32.totalorder %s78, %s80
      %p87 = scmp.eq.s32.totalorder %s23, 1
      %p88 = por %p86, %p87
      %p89 = scmp.ne.s32.totalorder %s80, %s81
      %p90 = scmp.eq.s32.totalorder %s23, 0
      %p91 = por %p89, %p90
      %p92 = scmp.ne.s32.totalorder %s80, %s81
      %p93 = scmp.eq.s32.totalorder %s24, 1
      %p94 = por %p92, %p93
      %p96 = scmp.ne.s32.totalorder %s81, %s95
      %p97 = scmp.eq.s32.totalorder %s24, 0
      %p98 = por %p96, %p97
      %s99 = ssub.s32 %s18, %s25
      %p100 = scmp.eq.s32.totalorder %s99, 0
      %s102 = sadd.s32 %s101, 1
      %s103 = scalar_select %p100, %s101, %s102
      %p106 = pneg %p100
      %p107 = scmp.eq.s32.totalorder %s18, 1
      %p108 = por %p106, %p107
      %p109 = scmp.ne.s32.totalorder %s101, %s104
      %p110 = scmp.eq.s32.totalorder %s18, 0
      %p111 = por %p109, %p110
      %p112 = scmp.ne.s32.totalorder %s101, %s104
      %p113 = scmp.eq.s32.totalorder %s23, 1
      %p114 = por %p112, %p113
      %p115 = scmp.ne.s32.totalorder %s104, %s105
      %p116 = scmp.eq.s32.totalorder %s23, 0
      %p117 = por %p115, %p116
      %p118 = scmp.ne.s32.totalorder %s104, %s105
      %p119 = scmp.eq.s32.totalorder %s24, 1
      %p120 = por %p118, %p119
      %p122 = scmp.ne.s32.totalorder %s105, %s121
      %p123 = scmp.eq.s32.totalorder %s24, 0
      %p124 = por %p122, %p123
      %p125 = scmp.le.s32.totalorder 1, %s18
      %p126 = scmp.lt.s32.totalorder %s18, 3
      %p127 = pnand %p125, %p126
      %p128 = pneg %p127
      // Predicated region
      $region9: #{tpu_custom_call.1} parent=5 // pred_check
        _
      $region10: #{tpu_custom_call.1} parent=5 // pred_check_branch
        %130 = sbr.rel (%p127) target = $region12
      $region11: #{tpu_custom_call.1} parent=5 // pred_region
        %s131 = ssub.s32 %s18, 1
        // Predicated region
        $region13: #{tpu_custom_call.1} parent=11 // pred_check
          %p132 = pneg %p91
        $region14: #{tpu_custom_call.1} parent=11 // pred_check_branch
          %134 = sbr.rel (%p132) target = $region16
        $region15: #{tpu_custom_call.1} parent=11 // pred_region
          %136 = vsyncadd [#allocation7], 0
          %s137 = sshll.u32 %s2, 4
          %s138 = int_to_ptr.hbm [resolvable:$true] %s137
          %s139 = sshll.u32 [#allocation8], 4
          %s140 = int_to_ptr.vmem [resolvable:$true] %s139
          %145 = dma.hbm_to_vmem [thread:$0]  %s138, 1024, %s140, [#allocation7], 128, 128, 8
        $region16: #{tpu_custom_call.1} parent=11 // pred_fallthru
          _
      $region12: #{tpu_custom_call.1} parent=5 // pred_fallthru
        _
      %p146 = scmp.lt.s32.totalorder %s18, 2
      // Predicated region
      $region17: #{tpu_custom_call.1} parent=5 // pred_check
        %p147 = pneg %p146
      $region18: #{tpu_custom_call.1} parent=5 // pred_check_branch
        %149 = sbr.rel (%p147) target = $region20
      $region19: #{tpu_custom_call.1} parent=5 // pred_region
        // Predicated region
        $region21: #{tpu_custom_call.1} parent=19 // pred_check
          %p150 = pneg %p38
        $region22: #{tpu_custom_call.1} parent=19 // pred_check_branch
          %152 = sbr.rel (%p150) target = $region24
        $region23: #{tpu_custom_call.1} parent=19 // pred_region
          %s153 = sand.u32 %s28, 1
          %s154 = scalar_lea.sflag [#allocation4], %s153
          %s155 = sand.u32 %s28, 1
          %s156 = smul.addr %s155, 16
          %s157 = scalar_lea.vmem [#allocation3], %s156
          %s158 = smul.u32 2, %s18
          %160 = vsyncadd %s154, 0
          %s161 = smul.addr %s158, 8
          %s162 = scalar_lea.hbm %s0, %s161
          %s164 = sshll.u32 %s162, 4
          %s165 = int_to_ptr.hbm [resolvable:$true] %s164
          %s166 = sshll.u32 %s157, 4
          %s167 = int_to_ptr.vmem [resolvable:$true] %s166
          %169 = dma.hbm_to_vmem [thread:$0]  %s165, 256, %s167, %s154
        $region24: #{tpu_custom_call.1} parent=19 // pred_fallthru
          _
        // Predicated region
        $region25: #{tpu_custom_call.1} parent=19 // pred_check
          %p170 = pneg %p64
        $region26: #{tpu_custom_call.1} parent=19 // pred_check_branch
          %172 = sbr.rel (%p170) target = $region28
        $region27: #{tpu_custom_call.1} parent=19 // pred_region
          %s173 = sand.u32 %s18, 1
          %s174 = scalar_lea.sflag [#allocation7], %s173
          %s175 = sand.u32 %s54, 1
          %s176 = smul.addr %s175, 40
          %s177 = scalar_lea.vmem [#allocation6], %s176
          %s178 = smul.u32 20, %s18
          %180 = vsyncadd %s174, 0
          %s181 = smul.addr %s178, 2
          %s182 = scalar_lea.hbm %s1, %s181
          %s184 = sshll.u32 %s182, 4
          %s185 = int_to_ptr.hbm [resolvable:$true] %s184
          %s186 = sshll.u32 %s177, 4
          %s187 = int_to_ptr.vmem [resolvable:$true] %s186
          %189 = dma.hbm_to_vmem [thread:$0]  %s185, 640, %s187, %s174
        $region28: #{tpu_custom_call.1} parent=19 // pred_fallthru
          _
      $region20: #{tpu_custom_call.1} parent=5 // pred_fallthru
        _
      %p190 = scmp.le.s32.totalorder 1, %s18
      %p191 = scmp.lt.s32.totalorder %s18, 3
      %p192 = pnand %p190, %p191
      %p193 = pneg %p192
      // Predicated region
      $region29: #{tpu_custom_call.1} parent=5 // pred_check
        _
      $region30: #{tpu_custom_call.1} parent=5 // pred_check_branch
        %195 = sbr.rel (%p192) target = $region32
      $region31: #{tpu_custom_call.1} parent=5 // pred_region
        %s196 = ssub.s32 %s18, 1
        %s197 = sand.u32 %s31, 1
        %s198 = scalar_lea.sflag [#allocation4], %s197
        %s199 = sand.u32 %s31, 1
        %s200 = smul.addr %s199, 16
        %s201 = scalar_lea.vmem [#allocation3], %s200
        // Predicated region
        $region33: #{tpu_custom_call.1} parent=31 // pred_check
          %p202 = pneg %p44
        $region34: #{tpu_custom_call.1} parent=31 // pred_check_branch
          %204 = sbr.rel (%p202) target = $region36
        $region35: #{tpu_custom_call.1} parent=31 // pred_region
          %206 = dma.done %s198, 256
        $region36: #{tpu_custom_call.1} parent=31 // pred_fallthru
          _
        %s207 = sand.u32 %s23, 1
        %s208 = scalar_lea.sflag [#allocation7], %s207
        %s209 = sand.u32 %s57, 1
        %s210 = smul.addr %s209, 40
        %s211 = scalar_lea.vmem [#allocation6], %s210
        // Predicated region
        $region37: #{tpu_custom_call.1} parent=31 // pred_check
          %p212 = pneg %p70
        $region38: #{tpu_custom_call.1} parent=31 // pred_check_branch
          %214 = sbr.rel (%p212) target = $region40
        $region39: #{tpu_custom_call.1} parent=31 // pred_region
          %216 = dma.done %s208, 640
        $region40: #{tpu_custom_call.1} parent=31 // pred_fallthru
          _
        // Predicated region
        $region41: #{tpu_custom_call.1} parent=31 // pred_check
          %p217 = pneg %p91
        $region42: #{tpu_custom_call.1} parent=31 // pred_check_branch
          %219 = sbr.rel (%p217) target = $region44
        $region43: #{tpu_custom_call.1} parent=31 // pred_region
          %221 = dma.done [#allocation7], 1024
        $region44: #{tpu_custom_call.1} parent=31 // pred_fallthru
          _
        %s222 = sand.u32 %s31, 1
        %s223 = scalar_lea.sflag [#allocation4], %s222
        %s224 = sand.u32 %s31, 1
        %s225 = smul.addr %s224, 16
        %s226 = scalar_lea.vmem [#allocation3], %s225
        %p227 = pneg %p44
        %p228 = pneg %p41
        %s229 = sand.u32 %s23, 1
        %s230 = scalar_lea.sflag [#allocation7], %s229
        %s231 = sand.u32 %s57, 1
        %s232 = smul.addr %s231, 40
        %s233 = scalar_lea.vmem [#allocation6], %s232
        %p234 = pneg %p70
        %p235 = pneg %p67
        %p236 = pneg %p91
        %p237 = pneg %p88
        %p238 = pneg %p117
        %p239 = pneg %p114
        %s240 = sand.u32 %s104, 1
        %s241 = scalar_lea.sflag [#allocation5], %s240
        %s242 = sand.u32 %s104, 1
        %s243 = smul.addr %s242, 8
        %s244 = scalar_lea.vmem [#allocation9], %s243
        %s245 = smul.u32 2, %s23
        %s246 = smul.u32 20, %s23
        %v247 = vld [vmem:[%s201] sm:$0xff]
        %v248 = vld [vmem:[%s201 + $0x8] sm:$0xff]
        %v249 = vld [vmem:[#allocation8] sm:$0xff]
        %v250 = vld [vmem:[#allocation8 + $0x8] sm:$0xf]
        %v251 = vld [vmem:[#allocation8 + $0x10] sm:$0x3]
        %v252 = vld [vmem:[#allocation8 + $0x18] sm:$0x3]
        %v253 = vld [vmem:[#allocation8 + $0x20] sm:$0xf]
        %v254 = vld [vmem:[#allocation8 + $0x28] sm:$0xff]
        %v255 = vld [vmem:[#allocation8 + $0x30] sm:$0xff]
        %v256 = vld [vmem:[#allocation8 + $0x38] sm:$0xff]
        %258 = vset.pattern.permute.xlu0 8
        %259 = vperm.xlu0 %258, %v249
        %v260 = vpop.permute.xlu0 %259
        %vm262 = vcmask 64512
        %v263 = vsel %vm262, %v249, 0
        %265 = vmatpush.msra.mxu0 0.0
        %266 = vmatpush.msra.mxu0 0.0
        %267 = vmatpush.msra.mxu0 0.0
        %268 = vmatpush.msra.mxu0 0.0
        %269 = vmatpush.msra.mxu0 0.0
        %270 = vmatpush.msra.mxu0 0.0
        %271 = vmatpush.msra.mxu0 0.0
        %272 = vmatpush.msra.mxu0 0.0
        %273 = vmatpush.msra.mxu0 0.0
        %274 = vmatpush.msra.mxu0 0.0
        %275 = vmatpush.msra.mxu0 0.0
        %276 = vmatpush.msra.mxu0 0.0
        %277 = vmatpush.msra.mxu0 0.0
        %278 = vmatpush.msra.mxu0 0.0
        %279 = vmatpush.msra.mxu0 0.0
        %280 = vmatpush.msra.mxu0 %v247
        %281 = vmatmul.f32.gmra.mxu0 %v263
        %v282 = vpop.f32.mrf.mxu0
        %v283 = vadd.f32 %v260, %v282
        %284 = vdwg.mxu0
        %285 = vmatpush.msra.mxu0 0.0
        %286 = vmatpush.msra.mxu0 0.0
        %287 = vmatpush.msra.mxu0 0.0
        %288 = vmatpush.msra.mxu0 0.0
        %289 = vmatpush.msra.mxu0 0.0
        %290 = vmatpush.msra.mxu0 0.0
        %291 = vmatpush.msra.mxu0 0.0
        %292 = vmatpush.msra.mxu0 0.0
        %293 = vmatpush.msra.mxu0 0.0
        %294 = vmatpush.msra.mxu0 0.0
        %295 = vmatpush.msra.mxu0 0.0
        %296 = vmatpush.msra.mxu0 0.0
        %297 = vmatpush.msra.mxu0 0.0
        %298 = vmatpush.msra.mxu0 0.0
        %299 = vmatpush.msra.mxu0 0.0
        %300 = vmatpush.msra.mxu0 %v248
        %301 = vmatmul.f32.gmra.mxu0 %v263
        %v302 = vpop.f32.mrf.mxu0
        %v303 = vadd.f32 %v260, %v302
        %304 = vdwg.mxu0
        %v305 = vmax.f32 %v283, 0.0
        %v306 = vmax.f32 %v303, 0.0
        %308 = vset.pattern.permute.xlu0 8
        %309 = vperm.xlu0 %308, %v250
        %v310 = vpop.permute.xlu0 %309
        %v312 = vsel %vm262, %v250, 0
        %314 = vmatpush.msra.mxu0 0.0
        %315 = vmatpush.msra.mxu0 0.0
        %316 = vmatpush.msra.mxu0 0.0
        %317 = vmatpush.msra.mxu0 0.0
        %318 = vmatpush.msra.mxu0 0.0
        %319 = vmatpush.msra.mxu0 0.0
        %320 = vmatpush.msra.mxu0 0.0
        %321 = vmatpush.msra.mxu0 0.0
        %322 = vmatpush.msra.mxu0 0.0
        %323 = vmatpush.msra.mxu0 0.0
        %324 = vmatpush.msra.mxu0 0.0
        %325 = vmatpush.msra.mxu0 0.0
        %326 = vmatpush.msra.mxu0 0.0
        %327 = vmatpush.msra.mxu0 0.0
        %328 = vmatpush.msra.mxu0 0.0
        %329 = vmatpush.msra.mxu0 %v305
        %330 = vmatmul.f32.gmra.mxu0 %v312
        %v331 = vpop.f32.mrf.mxu0
        %v332 = vadd.f32 %v310, %v331
        %333 = vdwg.mxu0
        %334 = vmatpush.msra.mxu0 0.0
        %335 = vmatpush.msra.mxu0 0.0
        %336 = vmatpush.msra.mxu0 0.0
        %337 = vmatpush.msra.mxu0 0.0
        %338 = vmatpush.msra.mxu0 0.0
        %339 = vmatpush.msra.mxu0 0.0
        %340 = vmatpush.msra.mxu0 0.0
        %341 = vmatpush.msra.mxu0 0.0
        %342 = vmatpush.msra.mxu0 0.0
        %343 = vmatpush.msra.mxu0 0.0
        %344 = vmatpush.msra.mxu0 0.0
        %345 = vmatpush.msra.mxu0 0.0
        %346 = vmatpush.msra.mxu0 0.0
        %347 = vmatpush.msra.mxu0 0.0
        %348 = vmatpush.msra.mxu0 0.0
        %349 = vmatpush.msra.mxu0 %v306
        %350 = vmatmul.f32.gmra.mxu0 %v312
        %v351 = vpop.f32.mrf.mxu0
        %v352 = vadd.f32 %v310, %v351
        %353 = vdwg.mxu0
        %v354 = vmax.f32 %v332, 0.0
        %v355 = vmax.f32 %v352, 0.0
        %357 = vset.pattern.permute.xlu0 4
        %358 = vperm.xlu0 %357, %v251
        %v359 = vpop.permute.xlu0 %358
        %vm361 = vcmask 31744
        %v362 = vsel %vm361, %v251, 0
        %vm364 = vcmask 1043456
        %v366 = vsel %vm364, %v354, 0
        %v369 = vsel %vm364, %v355, 0
        %371 = vmatpush.msra.mxu0 0.0
        %372 = vmatpush.msra.mxu0 0.0
        %373 = vmatpush.msra.mxu0 0.0
        %374 = vmatpush.msra.mxu0 0.0
        %375 = vmatpush.msra.mxu0 0.0
        %376 = vmatpush.msra.mxu0 0.0
        %377 = vmatpush.msra.mxu0 0.0
        %378 = vmatpush.msra.mxu0 0.0
        %379 = vmatpush.msra.mxu0 0.0
        %380 = vmatpush.msra.mxu0 0.0
        %381 = vmatpush.msra.mxu0 0.0
        %382 = vmatpush.msra.mxu0 0.0
        %383 = vmatpush.msra.mxu0 0.0
        %384 = vmatpush.msra.mxu0 0.0
        %385 = vmatpush.msra.mxu0 0.0
        %386 = vmatpush.msra.mxu0 %v366
        %387 = vmatmul.f32.gmra.mxu0 %v362
        %v388 = vpop.f32.mrf.mxu0
        %v389 = vadd.f32 %v359, %v388
        %390 = vdwg.mxu0
        %391 = vmatpush.msra.mxu0 0.0
        %392 = vmatpush.msra.mxu0 0.0
        %393 = vmatpush.msra.mxu0 0.0
        %394 = vmatpush.msra.mxu0 0.0
        %395 = vmatpush.msra.mxu0 0.0
        %396 = vmatpush.msra.mxu0 0.0
        %397 = vmatpush.msra.mxu0 0.0
        %398 = vmatpush.msra.mxu0 0.0
        %399 = vmatpush.msra.mxu0 0.0
        %400 = vmatpush.msra.mxu0 0.0
        %401 = vmatpush.msra.mxu0 0.0
        %402 = vmatpush.msra.mxu0 0.0
        %403 = vmatpush.msra.mxu0 0.0
        %404 = vmatpush.msra.mxu0 0.0
        %405 = vmatpush.msra.mxu0 0.0
        %406 = vmatpush.msra.mxu0 %v369
        %407 = vmatmul.f32.gmra.mxu0 %v362
        %v408 = vpop.f32.mrf.mxu0
        %v409 = vadd.f32 %v359, %v408
        %410 = vdwg.mxu0
        %412 = vset.pattern.permute.xlu0 4
        %413 = vperm.xlu0 %412, %v252
        %v414 = vpop.permute.xlu0 %413
        %v416 = vsel %vm361, %v252, 0
        %418 = vmatpush.msra.mxu0 0.0
        %419 = vmatpush.msra.mxu0 0.0
        %420 = vmatpush.msra.mxu0 0.0
        %421 = vmatpush.msra.mxu0 0.0
        %422 = vmatpush.msra.mxu0 0.0
        %423 = vmatpush.msra.mxu0 0.0
        %424 = vmatpush.msra.mxu0 0.0
        %425 = vmatpush.msra.mxu0 0.0
        %426 = vmatpush.msra.mxu0 0.0
        %427 = vmatpush.msra.mxu0 0.0
        %428 = vmatpush.msra.mxu0 0.0
        %429 = vmatpush.msra.mxu0 0.0
        %430 = vmatpush.msra.mxu0 0.0
        %431 = vmatpush.msra.mxu0 0.0
        %432 = vmatpush.msra.mxu0 0.0
        %433 = vmatpush.msra.mxu0 %v366
        %434 = vmatmul.f32.gmra.mxu0 %v416
        %v435 = vpop.f32.mrf.mxu0
        %v436 = vadd.f32 %v414, %v435
        %437 = vdwg.mxu0
        %438 = vmatpush.msra.mxu0 0.0
        %439 = vmatpush.msra.mxu0 0.0
        %440 = vmatpush.msra.mxu0 0.0
        %441 = vmatpush.msra.mxu0 0.0
        %442 = vmatpush.msra.mxu0 0.0
        %443 = vmatpush.msra.mxu0 0.0
        %444 = vmatpush.msra.mxu0 0.0
        %445 = vmatpush.msra.mxu0 0.0
        %446 = vmatpush.msra.mxu0 0.0
        %447 = vmatpush.msra.mxu0 0.0
        %448 = vmatpush.msra.mxu0 0.0
        %449 = vmatpush.msra.mxu0 0.0
        %450 = vmatpush.msra.mxu0 0.0
        %451 = vmatpush.msra.mxu0 0.0
        %452 = vmatpush.msra.mxu0 0.0
        %453 = vmatpush.msra.mxu0 %v369
        %454 = vmatmul.f32.gmra.mxu0 %v416
        %v455 = vpop.f32.mrf.mxu0
        %v456 = vadd.f32 %v414, %v455
        %457 = vdwg.mxu0
        %v458 = vmul.f32 %v436, 0.5
        %v459 = vmul.f32 %v456, 0.5
        %v460 = vmul.f32 %v458, 1.442695
        %v461 = vpow.pop %v460
        %v462 = vmul.f32 %v459, 1.442695
        %v463 = vpow.pop %v462
        %v464 = vld [vmem:[%s211] sm:$0xf]
        %466 = vst [vmem:[#allocation1] ss:$4 sm:$0xff] %v464
        %v467 = vld.sshfl [vmem:[#allocation1] sm:$0xff pattern:$0x73625140]
        %v468 = vld.sshfl [vmem:[#allocation1 + $0x8] sm:$0xff pattern:$0x73625140]
        %v471 = vmul.f32 %v461, %v467
        %v472 = vmul.f32 %v463, %v468
        %v473 = vadd.f32 %v389, %v471
        %v474 = vadd.f32 %v409, %v472
        %v477 = vrot.slane %v474, 6
        %vm478 = vcmask 1041408
        %v479 = vsel %vm478, %v473, %v477
        %481 = vst [vmem:[#allocation2] sm:$0xf] %v479
        %v482 = vld [vmem:[%s211 + $0x4] sm:$0xf]
        %484 = vst [vmem:[#allocation1] ss:$4 sm:$0xff] %v482
        %v485 = vld.sshfl [vmem:[#allocation1] sm:$0xff pattern:$0x73625140]
        %v486 = vld.sshfl [vmem:[#allocation1 + $0x8] sm:$0xff pattern:$0x73625140]
        %v489 = vmul.f32 %v461, %v485
        %v490 = vmul.f32 %v463, %v486
        %v491 = vadd.f32 %v389, %v489
        %v492 = vadd.f32 %v409, %v490
        %v495 = vrot.slane %v492, 6
        %v496 = vsel %vm478, %v491, %v495
        %498 = vst [vmem:[#allocation2 + $0x4] sm:$0xf] %v496
        %v499 = vld [vmem:[%s211 + $0x8] sm:$0xf]
        %501 = vst [vmem:[#allocation1] ss:$4 sm:$0xff] %v499
        %v502 = vld.sshfl [vmem:[#allocation1] sm:$0xff pattern:$0x73625140]
        %v503 = vld.sshfl [vmem:[#allocation1 + $0x8] sm:$0xff pattern:$0x73625140]
        %v506 = vmul.f32 %v461, %v502
        %v507 = vmul.f32 %v463, %v503
        %v508 = vadd.f32 %v389, %v506
        %v509 = vadd.f32 %v409, %v507
        %v512 = vrot.slane %v509, 6
        %v513 = vsel %vm478, %v508, %v512
        %515 = vst [vmem:[#allocation2 + $0x8] sm:$0xf] %v513
        %v516 = vld [vmem:[%s211 + $0xc] sm:$0xf]
        %518 = vst [vmem:[#allocation1] ss:$4 sm:$0xff] %v516
        %v519 = vld.sshfl [vmem:[#allocation1] sm:$0xff pattern:$0x73625140]
        %v520 = vld.sshfl [vmem:[#allocation1 + $0x8] sm:$0xff pattern:$0x73625140]
        %v523 = vmul.f32 %v461, %v519
        %v524 = vmul.f32 %v463, %v520
        %v525 = vadd.f32 %v389, %v523
        %v526 = vadd.f32 %v409, %v524
        %v529 = vrot.slane %v526, 6
        %v530 = vsel %vm478, %v525, %v529
        %532 = vst [vmem:[#allocation2 + $0xc] sm:$0xf] %v530
        %v533 = vld [vmem:[%s211 + $0x10] sm:$0xf]
        %535 = vst [vmem:[#allocation1] ss:$4 sm:$0xff] %v533
        %v536 = vld.sshfl [vmem:[#allocation1] sm:$0xff pattern:$0x73625140]
        %v537 = vld.sshfl [vmem:[#allocation1 + $0x8] sm:$0xff pattern:$0x73625140]
        %v540 = vmul.f32 %v461, %v536
        %v541 = vmul.f32 %v463, %v537
        %v542 = vadd.f32 %v389, %v540
        %v543 = vadd.f32 %v409, %v541
        %v546 = vrot.slane %v543, 6
        %v547 = vsel %vm478, %v542, %v546
        %549 = vst [vmem:[#allocation2 + $0x10] sm:$0xf] %v547
        %v550 = vld [vmem:[%s211 + $0x14] sm:$0xf]
        %552 = vst [vmem:[#allocation1] ss:$4 sm:$0xff] %v550
        %v553 = vld.sshfl [vmem:[#allocation1] sm:$0xff pattern:$0x73625140]
        %v554 = vld.sshfl [vmem:[#allocation1 + $0x8] sm:$0xff pattern:$0x73625140]
        %v557 = vmul.f32 %v461, %v553
        %v558 = vmul.f32 %v463, %v554
        %v559 = vadd.f32 %v389, %v557
        %v560 = vadd.f32 %v409, %v558
        %v563 = vrot.slane %v560, 6
        %v564 = vsel %vm478, %v559, %v563
        %566 = vst [vmem:[#allocation2 + $0x14] sm:$0xf] %v564
        %v567 = vld [vmem:[%s211 + $0x18] sm:$0xf]
        %569 = vst [vmem:[#allocation1] ss:$4 sm:$0xff] %v567
        %v570 = vld.sshfl [vmem:[#allocation1] sm:$0xff pattern:$0x73625140]
        %v571 = vld.sshfl [vmem:[#allocation1 + $0x8] sm:$0xff pattern:$0x73625140]
        %v574 = vmul.f32 %v461, %v570
        %v575 = vmul.f32 %v463, %v571
        %v576 = vadd.f32 %v389, %v574
        %v577 = vadd.f32 %v409, %v575
        %v580 = vrot.slane %v577, 6
        %v581 = vsel %vm478, %v576, %v580
        %583 = vst [vmem:[#allocation2 + $0x18] sm:$0xf] %v581
        %v584 = vld [vmem:[%s211 + $0x1c] sm:$0xf]
        %586 = vst [vmem:[#allocation1] ss:$4 sm:$0xff] %v584
        %v587 = vld.sshfl [vmem:[#allocation1] sm:$0xff pattern:$0x73625140]
        %v588 = vld.sshfl [vmem:[#allocation1 + $0x8] sm:$0xff pattern:$0x73625140]
        %v591 = vmul.f32 %v461, %v587
        %v592 = vmul.f32 %v463, %v588
        %v593 = vadd.f32 %v389, %v591
        %v594 = vadd.f32 %v409, %v592
        %v597 = vrot.slane %v594, 6
        %v598 = vsel %vm478, %v593, %v597
        %600 = vst [vmem:[#allocation2 + $0x1c] sm:$0xf] %v598
        %v601 = vld [vmem:[%s211 + $0x20] sm:$0xf]
        %603 = vst [vmem:[#allocation1] ss:$4 sm:$0xff] %v601
        %v604 = vld.sshfl [vmem:[#allocation1] sm:$0xff pattern:$0x73625140]
        %v605 = vld.sshfl [vmem:[#allocation1 + $0x8] sm:$0xff pattern:$0x73625140]
        %v608 = vmul.f32 %v461, %v604
        %v609 = vmul.f32 %v463, %v605
        %v610 = vadd.f32 %v389, %v608
        %v611 = vadd.f32 %v409, %v609
        %v614 = vrot.slane %v611, 6
        %v615 = vsel %vm478, %v610, %v614
        %617 = vst [vmem:[#allocation2 + $0x20] sm:$0xf] %v615
        %v618 = vld [vmem:[%s211 + $0x24] sm:$0xf]
        %620 = vst [vmem:[#allocation1] ss:$4 sm:$0xff] %v618
        %v621 = vld.sshfl [vmem:[#allocation1] sm:$0xff pattern:$0x73625140]
        %v622 = vld.sshfl [vmem:[#allocation1 + $0x8] sm:$0xff pattern:$0x73625140]
        %v625 = vmul.f32 %v461, %v621
        %v626 = vmul.f32 %v463, %v622
        %v627 = vadd.f32 %v389, %v625
        %v628 = vadd.f32 %v409, %v626
        %v631 = vrot.slane %v628, 6
        %v632 = vsel %vm478, %v627, %v631
        %634 = vst [vmem:[#allocation2 + $0x24] sm:$0xf] %v632
        %v635 = vld [vmem:[#allocation2] sm:$0xff]
        %v636 = vld [vmem:[#allocation2 + $0x8] sm:$0xff]
        %v637 = vld [vmem:[#allocation2 + $0x10] sm:$0xff]
        %v638 = vld [vmem:[#allocation2 + $0x18] sm:$0xff]
        %v639 = vld [vmem:[#allocation2 + $0x20] sm:$0xff]
        %641 = vset.pattern.permute.xlu0 2
        %642 = vperm.xlu0 %641, %v253
        %v643 = vpop.permute.xlu0 %642
        %650 = vst [vmem:[#allocation1] ss:$4 sm:$0xff] %v635
        %s651 = scalar_lea.vmem [#allocation1], 32
        %652 = vst [vmem:[%s651] ss:$4 sm:$0xff] %v636
        %v653 = vld.sshfl [vmem:[#allocation1] sm:$0xff pattern:$0x73625140]
        %v654 = vld.sshfl [vmem:[#allocation1 + $0x8] sm:$0xff pattern:$0x73625140]
        %v655 = vld.sshfl [vmem:[#allocation1 + $0x10] sm:$0xff pattern:$0x73625140]
        %v656 = vld.sshfl [vmem:[#allocation1 + $0x18] sm:$0xff pattern:$0x73625140]
        %v657 = vld.sshfl [vmem:[#allocation1 + $0x20] sm:$0xff pattern:$0x73625140]
        %v658 = vld.sshfl [vmem:[#allocation1 + $0x28] sm:$0xff pattern:$0x73625140]
        %v659 = vld.sshfl [vmem:[#allocation1 + $0x30] sm:$0xff pattern:$0x73625140]
        %v660 = vld.sshfl [vmem:[#allocation1 + $0x38] sm:$0xff pattern:$0x73625140]
        %661 = vst [vmem:[#allocation1] ss:$4 sm:$0xff] %v637
        %662 = vst [vmem:[%s651] ss:$4 sm:$0xff] %v638
        %v663 = vld.sshfl [vmem:[#allocation1] sm:$0xff pattern:$0x73625140]
        %v664 = vld.sshfl [vmem:[#allocation1 + $0x8] sm:$0xff pattern:$0x73625140]
        %v665 = vld.sshfl [vmem:[#allocation1 + $0x10] sm:$0xff pattern:$0x73625140]
        %v666 = vld.sshfl [vmem:[#allocation1 + $0x18] sm:$0xff pattern:$0x73625140]
        %v667 = vld.sshfl [vmem:[#allocation1 + $0x20] sm:$0xff pattern:$0x73625140]
        %v668 = vld.sshfl [vmem:[#allocation1 + $0x28] sm:$0xff pattern:$0x73625140]
        %v669 = vld.sshfl [vmem:[#allocation1 + $0x30] sm:$0xff pattern:$0x73625140]
        %v670 = vld.sshfl [vmem:[#allocation1 + $0x38] sm:$0xff pattern:$0x73625140]
        %671 = vst [vmem:[#allocation1] ss:$4 sm:$0xff] %v639
        %v672 = vld.sshfl [vmem:[#allocation1] sm:$0xff pattern:$0x73625140]
        %v673 = vld.sshfl [vmem:[#allocation1 + $0x8] sm:$0xff pattern:$0x73625140]
        %v674 = vld.sshfl [vmem:[#allocation1 + $0x10] sm:$0xff pattern:$0x73625140]
        %v675 = vld.sshfl [vmem:[#allocation1 + $0x18] sm:$0xff pattern:$0x73625140]
        %vm676 = vcmask 15360
        %v677 = vsel %vm676, %v253, 0
        %v679 = vsel %vm478, %v653, 0
        %v681 = vsel %vm478, %v654, 0
        %v683 = vsel %vm478, %v655, 0
        %v685 = vsel %vm478, %v656, 0
        %v687 = vsel %vm478, %v657, 0
        %v689 = vsel %vm478, %v658, 0
        %v691 = vsel %vm478, %v659, 0
        %v693 = vsel %vm478, %v660, 0
        %v695 = vsel %vm478, %v663, 0
        %v697 = vsel %vm478, %v664, 0
        %v699 = vsel %vm478, %v665, 0
        %v701 = vsel %vm478, %v666, 0
        %v703 = vsel %vm478, %v667, 0
        %v705 = vsel %vm478, %v668, 0
        %v707 = vsel %vm478, %v669, 0
        %v709 = vsel %vm478, %v670, 0
        %v711 = vsel %vm478, %v672, 0
        %v713 = vsel %vm478, %v673, 0
        %v715 = vsel %vm478, %v674, 0
        %v717 = vsel %vm478, %v675, 0
        %719 = vmatpush.msra.mxu0 0.0
        %720 = vmatpush.msra.mxu0 0.0
        %721 = vmatpush.msra.mxu0 0.0
        %722 = vmatpush.msra.mxu0 0.0
        %723 = vmatpush.msra.mxu0 0.0
        %724 = vmatpush.msra.mxu0 0.0
        %725 = vmatpush.msra.mxu0 0.0
        %726 = vmatpush.msra.mxu0 0.0
        %727 = vmatpush.msra.mxu0 0.0
        %728 = vmatpush.msra.mxu0 0.0
        %729 = vmatpush.msra.mxu0 0.0
        %730 = vmatpush.msra.mxu0 0.0
        %731 = vmatpush.msra.mxu0 0.0
        %732 = vmatpush.msra.mxu0 0.0
        %733 = vmatpush.msra.mxu0 0.0
        %734 = vmatpush.msra.mxu0 %v679
        %735 = vmatmul.f32.gmra.mxu0 %v677
        %v736 = vpop.f32.mrf.mxu0
        %v737 = vadd.f32 %v643, %v736
        %738 = vdwg.mxu0
        %739 = vmatpush.msra.mxu0 0.0
        %740 = vmatpush.msra.mxu0 0.0
        %741 = vmatpush.msra.mxu0 0.0
        %742 = vmatpush.msra.mxu0 0.0
        %743 = vmatpush.msra.mxu0 0.0
        %744 = vmatpush.msra.mxu0 0.0
        %745 = vmatpush.msra.mxu0 0.0
        %746 = vmatpush.msra.mxu0 0.0
        %747 = vmatpush.msra.mxu0 0.0
        %748 = vmatpush.msra.mxu0 0.0
        %749 = vmatpush.msra.mxu0 0.0
        %750 = vmatpush.msra.mxu0 0.0
        %751 = vmatpush.msra.mxu0 0.0
        %752 = vmatpush.msra.mxu0 0.0
        %753 = vmatpush.msra.mxu0 0.0
        %754 = vmatpush.msra.mxu0 %v681
        %755 = vmatmul.f32.gmra.mxu0 %v677
        %v756 = vpop.f32.mrf.mxu0
        %v757 = vadd.f32 %v643, %v756
        %758 = vdwg.mxu0
        %759 = vmatpush.msra.mxu0 0.0
        %760 = vmatpush.msra.mxu0 0.0
        %761 = vmatpush.msra.mxu0 0.0
        %762 = vmatpush.msra.mxu0 0.0
        %763 = vmatpush.msra.mxu0 0.0
        %764 = vmatpush.msra.mxu0 0.0
        %765 = vmatpush.msra.mxu0 0.0
        %766 = vmatpush.msra.mxu0 0.0
        %767 = vmatpush.msra.mxu0 0.0
        %768 = vmatpush.msra.mxu0 0.0
        %769 = vmatpush.msra.mxu0 0.0
        %770 = vmatpush.msra.mxu0 0.0
        %771 = vmatpush.msra.mxu0 0.0
        %772 = vmatpush.msra.mxu0 0.0
        %773 = vmatpush.msra.mxu0 0.0
        %774 = vmatpush.msra.mxu0 %v683
        %775 = vmatmul.f32.gmra.mxu0 %v677
        %v776 = vpop.f32.mrf.mxu0
        %v777 = vadd.f32 %v643, %v776
        %778 = vdwg.mxu0
        %779 = vmatpush.msra.mxu0 0.0
        %780 = vmatpush.msra.mxu0 0.0
        %781 = vmatpush.msra.mxu0 0.0
        %782 = vmatpush.msra.mxu0 0.0
        %783 = vmatpush.msra.mxu0 0.0
        %784 = vmatpush.msra.mxu0 0.0
        %785 = vmatpush.msra.mxu0 0.0
        %786 = vmatpush.msra.mxu0 0.0
        %787 = vmatpush.msra.mxu0 0.0
        %788 = vmatpush.msra.mxu0 0.0
        %789 = vmatpush.msra.mxu0 0.0
        %790 = vmatpush.msra.mxu0 0.0
        %791 = vmatpush.msra.mxu0 0.0
        %792 = vmatpush.msra.mxu0 0.0
        %793 = vmatpush.msra.mxu0 0.0
        %794 = vmatpush.msra.mxu0 %v685
        %795 = vmatmul.f32.gmra.mxu0 %v677
        %v796 = vpop.f32.mrf.mxu0
        %v797 = vadd.f32 %v643, %v796
        %798 = vdwg.mxu0
        %799 = vmatpush.msra.mxu0 0.0
        %800 = vmatpush.msra.mxu0 0.0
        %801 = vmatpush.msra.mxu0 0.0
        %802 = vmatpush.msra.mxu0 0.0
        %803 = vmatpush.msra.mxu0 0.0
        %804 = vmatpush.msra.mxu0 0.0
        %805 = vmatpush.msra.mxu0 0.0
        %806 = vmatpush.msra.mxu0 0.0
        %807 = vmatpush.msra.mxu0 0.0
        %808 = vmatpush.msra.mxu0 0.0
        %809 = vmatpush.msra.mxu0 0.0
        %810 = vmatpush.msra.mxu0 0.0
        %811 = vmatpush.msra.mxu0 0.0
        %812 = vmatpush.msra.mxu0 0.0
        %813 = vmatpush.msra.mxu0 0.0
        %814 = vmatpush.msra.mxu0 %v687
        %815 = vmatmul.f32.gmra.mxu0 %v677
        %v816 = vpop.f32.mrf.mxu0
        %v817 = vadd.f32 %v643, %v816
        %818 = vdwg.mxu0
        %819 = vmatpush.msra.mxu0 0.0
        %820 = vmatpush.msra.mxu0 0.0
        %821 = vmatpush.msra.mxu0 0.0
        %822 = vmatpush.msra.mxu0 0.0
        %823 = vmatpush.msra.mxu0 0.0
        %824 = vmatpush.msra.mxu0 0.0
        %825 = vmatpush.msra.mxu0 0.0
        %826 = vmatpush.msra.mxu0 0.0
        %827 = vmatpush.msra.mxu0 0.0
        %828 = vmatpush.msra.mxu0 0.0
        %829 = vmatpush.msra.mxu0 0.0
        %830 = vmatpush.msra.mxu0 0.0
        %831 = vmatpush.msra.mxu0 0.0
        %832 = vmatpush.msra.mxu0 0.0
        %833 = vmatpush.msra.mxu0 0.0
        %834 = vmatpush.msra.mxu0 %v689
        %835 = vmatmul.f32.gmra.mxu0 %v677
        %v836 = vpop.f32.mrf.mxu0
        %v837 = vadd.f32 %v643, %v836
        %838 = vdwg.mxu0
        %839 = vmatpush.msra.mxu0 0.0
        %840 = vmatpush.msra.mxu0 0.0
        %841 = vmatpush.msra.mxu0 0.0
        %842 = vmatpush.msra.mxu0 0.0
        %843 = vmatpush.msra.mxu0 0.0
        %844 = vmatpush.msra.mxu0 0.0
        %845 = vmatpush.msra.mxu0 0.0
        %846 = vmatpush.msra.mxu0 0.0
        %847 = vmatpush.msra.mxu0 0.0
        %848 = vmatpush.msra.mxu0 0.0
        %849 = vmatpush.msra.mxu0 0.0
        %850 = vmatpush.msra.mxu0 0.0
        %851 = vmatpush.msra.mxu0 0.0
        %852 = vmatpush.msra.mxu0 0.0
        %853 = vmatpush.msra.mxu0 0.0
        %854 = vmatpush.msra.mxu0 %v691
        %855 = vmatmul.f32.gmra.mxu0 %v677
        %v856 = vpop.f32.mrf.mxu0
        %v857 = vadd.f32 %v643, %v856
        %858 = vdwg.mxu0
        %859 = vmatpush.msra.mxu0 0.0
        %860 = vmatpush.msra.mxu0 0.0
        %861 = vmatpush.msra.mxu0 0.0
        %862 = vmatpush.msra.mxu0 0.0
        %863 = vmatpush.msra.mxu0 0.0
        %864 = vmatpush.msra.mxu0 0.0
        %865 = vmatpush.msra.mxu0 0.0
        %866 = vmatpush.msra.mxu0 0.0
        %867 = vmatpush.msra.mxu0 0.0
        %868 = vmatpush.msra.mxu0 0.0
        %869 = vmatpush.msra.mxu0 0.0
        %870 = vmatpush.msra.mxu0 0.0
        %871 = vmatpush.msra.mxu0 0.0
        %872 = vmatpush.msra.mxu0 0.0
        %873 = vmatpush.msra.mxu0 0.0
        %874 = vmatpush.msra.mxu0 %v693
        %875 = vmatmul.f32.gmra.mxu0 %v677
        %v876 = vpop.f32.mrf.mxu0
        %v877 = vadd.f32 %v643, %v876
        %878 = vdwg.mxu0
        %879 = vmatpush.msra.mxu0 0.0
        %880 = vmatpush.msra.mxu0 0.0
        %881 = vmatpush.msra.mxu0 0.0
        %882 = vmatpush.msra.mxu0 0.0
        %883 = vmatpush.msra.mxu0 0.0
        %884 = vmatpush.msra.mxu0 0.0
        %885 = vmatpush.msra.mxu0 0.0
        %886 = vmatpush.msra.mxu0 0.0
        %887 = vmatpush.msra.mxu0 0.0
        %888 = vmatpush.msra.mxu0 0.0
        %889 = vmatpush.msra.mxu0 0.0
        %890 = vmatpush.msra.mxu0 0.0
        %891 = vmatpush.msra.mxu0 0.0
        %892 = vmatpush.msra.mxu0 0.0
        %893 = vmatpush.msra.mxu0 0.0
        %894 = vmatpush.msra.mxu0 %v695
        %895 = vmatmul.f32.gmra.mxu0 %v677
        %v896 = vpop.f32.mrf.mxu0
        %v897 = vadd.f32 %v643, %v896
        %898 = vdwg.mxu0
        %899 = vmatpush.msra.mxu0 0.0
        %900 = vmatpush.msra.mxu0 0.0
        %901 = vmatpush.msra.mxu0 0.0
        %902 = vmatpush.msra.mxu0 0.0
        %903 = vmatpush.msra.mxu0 0.0
        %904 = vmatpush.msra.mxu0 0.0
        %905 = vmatpush.msra.mxu0 0.0
        %906 = vmatpush.msra.mxu0 0.0
        %907 = vmatpush.msra.mxu0 0.0
        %908 = vmatpush.msra.mxu0 0.0
        %909 = vmatpush.msra.mxu0 0.0
        %910 = vmatpush.msra.mxu0 0.0
        %911 = vmatpush.msra.mxu0 0.0
        %912 = vmatpush.msra.mxu0 0.0
        %913 = vmatpush.msra.mxu0 0.0
        %914 = vmatpush.msra.mxu0 %v697
        %915 = vmatmul.f32.gmra.mxu0 %v677
        %v916 = vpop.f32.mrf.mxu0
        %v917 = vadd.f32 %v643, %v916
        %918 = vdwg.mxu0
        %919 = vmatpush.msra.mxu0 0.0
        %920 = vmatpush.msra.mxu0 0.0
        %921 = vmatpush.msra.mxu0 0.0
        %922 = vmatpush.msra.mxu0 0.0
        %923 = vmatpush.msra.mxu0 0.0
        %924 = vmatpush.msra.mxu0 0.0
        %925 = vmatpush.msra.mxu0 0.0
        %926 = vmatpush.msra.mxu0 0.0
        %927 = vmatpush.msra.mxu0 0.0
        %928 = vmatpush.msra.mxu0 0.0
        %929 = vmatpush.msra.mxu0 0.0
        %930 = vmatpush.msra.mxu0 0.0
        %931 = vmatpush.msra.mxu0 0.0
        %932 = vmatpush.msra.mxu0 0.0
        %933 = vmatpush.msra.mxu0 0.0
        %934 = vmatpush.msra.mxu0 %v699
        %935 = vmatmul.f32.gmra.mxu0 %v677
        %v936 = vpop.f32.mrf.mxu0
        %v937 = vadd.f32 %v643, %v936
        %938 = vdwg.mxu0
        %939 = vmatpush.msra.mxu0 0.0
        %940 = vmatpush.msra.mxu0 0.0
        %941 = vmatpush.msra.mxu0 0.0
        %942 = vmatpush.msra.mxu0 0.0
        %943 = vmatpush.msra.mxu0 0.0
        %944 = vmatpush.msra.mxu0 0.0
        %945 = vmatpush.msra.mxu0 0.0
        %946 = vmatpush.msra.mxu0 0.0
        %947 = vmatpush.msra.mxu0 0.0
        %948 = vmatpush.msra.mxu0 0.0
        %949 = vmatpush.msra.mxu0 0.0
        %950 = vmatpush.msra.mxu0 0.0
        %951 = vmatpush.msra.mxu0 0.0
        %952 = vmatpush.msra.mxu0 0.0
        %953 = vmatpush.msra.mxu0 0.0
        %954 = vmatpush.msra.mxu0 %v701
        %955 = vmatmul.f32.gmra.mxu0 %v677
        %v956 = vpop.f32.mrf.mxu0
        %v957 = vadd.f32 %v643, %v956
        %958 = vdwg.mxu0
        %959 = vmatpush.msra.mxu0 0.0
        %960 = vmatpush.msra.mxu0 0.0
        %961 = vmatpush.msra.mxu0 0.0
        %962 = vmatpush.msra.mxu0 0.0
        %963 = vmatpush.msra.mxu0 0.0
        %964 = vmatpush.msra.mxu0 0.0
        %965 = vmatpush.msra.mxu0 0.0
        %966 = vmatpush.msra.mxu0 0.0
        %967 = vmatpush.msra.mxu0 0.0
        %968 = vmatpush.msra.mxu0 0.0
        %969 = vmatpush.msra.mxu0 0.0
        %970 = vmatpush.msra.mxu0 0.0
        %971 = vmatpush.msra.mxu0 0.0
        %972 = vmatpush.msra.mxu0 0.0
        %973 = vmatpush.msra.mxu0 0.0
        %974 = vmatpush.msra.mxu0 %v703
        %975 = vmatmul.f32.gmra.mxu0 %v677
        %v976 = vpop.f32.mrf.mxu0
        %v977 = vadd.f32 %v643, %v976
        %978 = vdwg.mxu0
        %979 = vmatpush.msra.mxu0 0.0
        %980 = vmatpush.msra.mxu0 0.0
        %981 = vmatpush.msra.mxu0 0.0
        %982 = vmatpush.msra.mxu0 0.0
        %983 = vmatpush.msra.mxu0 0.0
        %984 = vmatpush.msra.mxu0 0.0
        %985 = vmatpush.msra.mxu0 0.0
        %986 = vmatpush.msra.mxu0 0.0
        %987 = vmatpush.msra.mxu0 0.0
        %988 = vmatpush.msra.mxu0 0.0
        %989 = vmatpush.msra.mxu0 0.0
        %990 = vmatpush.msra.mxu0 0.0
        %991 = vmatpush.msra.mxu0 0.0
        %992 = vmatpush.msra.mxu0 0.0
        %993 = vmatpush.msra.mxu0 0.0
        %994 = vmatpush.msra.mxu0 %v705
        %995 = vmatmul.f32.gmra.mxu0 %v677
        %v996 = vpop.f32.mrf.mxu0
        %v997 = vadd.f32 %v643, %v996
        %998 = vdwg.mxu0
        %999 = vmatpush.msra.mxu0 0.0
        %1000 = vmatpush.msra.mxu0 0.0
        %1001 = vmatpush.msra.mxu0 0.0
        %1002 = vmatpush.msra.mxu0 0.0
        %1003 = vmatpush.msra.mxu0 0.0
        %1004 = vmatpush.msra.mxu0 0.0
        %1005 = vmatpush.msra.mxu0 0.0
        %1006 = vmatpush.msra.mxu0 0.0
        %1007 = vmatpush.msra.mxu0 0.0
        %1008 = vmatpush.msra.mxu0 0.0
        %1009 = vmatpush.msra.mxu0 0.0
        %1010 = vmatpush.msra.mxu0 0.0
        %1011 = vmatpush.msra.mxu0 0.0
        %1012 = vmatpush.msra.mxu0 0.0
        %1013 = vmatpush.msra.mxu0 0.0
        %1014 = vmatpush.msra.mxu0 %v707
        %1015 = vmatmul.f32.gmra.mxu0 %v677
        %v1016 = vpop.f32.mrf.mxu0
        %v1017 = vadd.f32 %v643, %v1016
        %1018 = vdwg.mxu0
        %1019 = vmatpush.msra.mxu0 0.0
        %1020 = vmatpush.msra.mxu0 0.0
        %1021 = vmatpush.msra.mxu0 0.0
        %1022 = vmatpush.msra.mxu0 0.0
        %1023 = vmatpush.msra.mxu0 0.0
        %1024 = vmatpush.msra.mxu0 0.0
        %1025 = vmatpush.msra.mxu0 0.0
        %1026 = vmatpush.msra.mxu0 0.0
        %1027 = vmatpush.msra.mxu0 0.0
        %1028 = vmatpush.msra.mxu0 0.0
        %1029 = vmatpush.msra.mxu0 0.0
        %1030 = vmatpush.msra.mxu0 0.0
        %1031 = vmatpush.msra.mxu0 0.0
        %1032 = vmatpush.msra.mxu0 0.0
        %1033 = vmatpush.msra.mxu0 0.0
        %1034 = vmatpush.msra.mxu0 %v709
        %1035 = vmatmul.f32.gmra.mxu0 %v677
        %v1036 = vpop.f32.mrf.mxu0
        %v1037 = vadd.f32 %v643, %v1036
        %1038 = vdwg.mxu0
        %1039 = vmatpush.msra.mxu0 0.0
        %1040 = vmatpush.msra.mxu0 0.0
        %1041 = vmatpush.msra.mxu0 0.0
        %1042 = vmatpush.msra.mxu0 0.0
        %1043 = vmatpush.msra.mxu0 0.0
        %1044 = vmatpush.msra.mxu0 0.0
        %1045 = vmatpush.msra.mxu0 0.0
        %1046 = vmatpush.msra.mxu0 0.0
        %1047 = vmatpush.msra.mxu0 0.0
        %1048 = vmatpush.msra.mxu0 0.0
        %1049 = vmatpush.msra.mxu0 0.0
        %1050 = vmatpush.msra.mxu0 0.0
        %1051 = vmatpush.msra.mxu0 0.0
        %1052 = vmatpush.msra.mxu0 0.0
        %1053 = vmatpush.msra.mxu0 0.0
        %1054 = vmatpush.msra.mxu0 %v711
        %1055 = vmatmul.f32.gmra.mxu0 %v677
        %v1056 = vpop.f32.mrf.mxu0
        %v1057 = vadd.f32 %v643, %v1056
        %1058 = vdwg.mxu0
        %1059 = vmatpush.msra.mxu0 0.0
        %1060 = vmatpush.msra.mxu0 0.0
        %1061 = vmatpush.msra.mxu0 0.0
        %1062 = vmatpush.msra.mxu0 0.0
        %1063 = vmatpush.msra.mxu0 0.0
        %1064 = vmatpush.msra.mxu0 0.0
        %1065 = vmatpush.msra.mxu0 0.0
        %1066 = vmatpush.msra.mxu0 0.0
        %1067 = vmatpush.msra.mxu0 0.0
        %1068 = vmatpush.msra.mxu0 0.0
        %1069 = vmatpush.msra.mxu0 0.0
        %1070 = vmatpush.msra.mxu0 0.0
        %1071 = vmatpush.msra.mxu0 0.0
        %1072 = vmatpush.msra.mxu0 0.0
        %1073 = vmatpush.msra.mxu0 0.0
        %1074 = vmatpush.msra.mxu0 %v713
        %1075 = vmatmul.f32.gmra.mxu0 %v677
        %v1076 = vpop.f32.mrf.mxu0
        %v1077 = vadd.f32 %v643, %v1076
        %1078 = vdwg.mxu0
        %1079 = vmatpush.msra.mxu0 0.0
        %1080 = vmatpush.msra.mxu0 0.0
        %1081 = vmatpush.msra.mxu0 0.0
        %1082 = vmatpush.msra.mxu0 0.0
        %1083 = vmatpush.msra.mxu0 0.0
        %1084 = vmatpush.msra.mxu0 0.0
        %1085 = vmatpush.msra.mxu0 0.0
        %1086 = vmatpush.msra.mxu0 0.0
        %1087 = vmatpush.msra.mxu0 0.0
        %1088 = vmatpush.msra.mxu0 0.0
        %1089 = vmatpush.msra.mxu0 0.0
        %1090 = vmatpush.msra.mxu0 0.0
        %1091 = vmatpush.msra.mxu0 0.0
        %1092 = vmatpush.msra.mxu0 0.0
        %1093 = vmatpush.msra.mxu0 0.0
        %1094 = vmatpush.msra.mxu0 %v715
        %1095 = vmatmul.f32.gmra.mxu0 %v677
        %v1096 = vpop.f32.mrf.mxu0
        %v1097 = vadd.f32 %v643, %v1096
        %1098 = vdwg.mxu0
        %1099 = vmatpush.msra.mxu0 0.0
        %1100 = vmatpush.msra.mxu0 0.0
        %1101 = vmatpush.msra.mxu0 0.0
        %1102 = vmatpush.msra.mxu0 0.0
        %1103 = vmatpush.msra.mxu0 0.0
        %1104 = vmatpush.msra.mxu0 0.0
        %1105 = vmatpush.msra.mxu0 0.0
        %1106 = vmatpush.msra.mxu0 0.0
        %1107 = vmatpush.msra.mxu0 0.0
        %1108 = vmatpush.msra.mxu0 0.0
        %1109 = vmatpush.msra.mxu0 0.0
        %1110 = vmatpush.msra.mxu0 0.0
        %1111 = vmatpush.msra.mxu0 0.0
        %1112 = vmatpush.msra.mxu0 0.0
        %1113 = vmatpush.msra.mxu0 0.0
        %1114 = vmatpush.msra.mxu0 %v717
        %1115 = vmatmul.f32.gmra.mxu0 %v677
        %v1116 = vpop.f32.mrf.mxu0
        %v1117 = vadd.f32 %v643, %v1116
        %1118 = vdwg.mxu0
        %v1119 = vmax.f32 %v737, 0.0
        %v1120 = vmax.f32 %v757, 0.0
        %v1121 = vmax.f32 %v777, 0.0
        %v1122 = vmax.f32 %v797, 0.0
        %v1123 = vmax.f32 %v817, 0.0
        %v1124 = vmax.f32 %v837, 0.0
        %v1125 = vmax.f32 %v857, 0.0
        %v1126 = vmax.f32 %v877, 0.0
        %v1127 = vmax.f32 %v897, 0.0
        %v1128 = vmax.f32 %v917, 0.0
        %v1129 = vmax.f32 %v937, 0.0
        %v1130 = vmax.f32 %v957, 0.0
        %v1131 = vmax.f32 %v977, 0.0
        %v1132 = vmax.f32 %v997, 0.0
        %v1133 = vmax.f32 %v1017, 0.0
        %v1134 = vmax.f32 %v1037, 0.0
        %v1135 = vmax.f32 %v1057, 0.0
        %v1136 = vmax.f32 %v1077, 0.0
        %v1137 = vmax.f32 %v1097, 0.0
        %v1138 = vmax.f32 %v1117, 0.0
        %1140 = vset.pattern.permute.xlu0 4
        %1141 = vperm.xlu0 %1140, %v254
        %v1142 = vpop.permute.xlu0 %1141
        %v1144 = vsel %vm361, %v254, 0
        %v1147 = vsel %vm364, %v1119, 0
        %v1150 = vsel %vm364, %v1120, 0
        %v1153 = vsel %vm364, %v1121, 0
        %v1156 = vsel %vm364, %v1122, 0
        %v1159 = vsel %vm364, %v1123, 0
        %v1162 = vsel %vm364, %v1124, 0
        %v1165 = vsel %vm364, %v1125, 0
        %v1168 = vsel %vm364, %v1126, 0
        %v1171 = vsel %vm364, %v1127, 0
        %v1174 = vsel %vm364, %v1128, 0
        %v1177 = vsel %vm364, %v1129, 0
        %v1180 = vsel %vm364, %v1130, 0
        %v1183 = vsel %vm364, %v1131, 0
        %v1186 = vsel %vm364, %v1132, 0
        %v1189 = vsel %vm364, %v1133, 0
        %v1192 = vsel %vm364, %v1134, 0
        %v1195 = vsel %vm364, %v1135, 0
        %v1198 = vsel %vm364, %v1136, 0
        %v1201 = vsel %vm364, %v1137, 0
        %v1204 = vsel %vm364, %v1138, 0
        %1206 = vmatpush.msra.mxu0 0.0
        %1207 = vmatpush.msra.mxu0 0.0
        %1208 = vmatpush.msra.mxu0 0.0
        %1209 = vmatpush.msra.mxu0 0.0
        %1210 = vmatpush.msra.mxu0 0.0
        %1211 = vmatpush.msra.mxu0 0.0
        %1212 = vmatpush.msra.mxu0 0.0
        %1213 = vmatpush.msra.mxu0 0.0
        %1214 = vmatpush.msra.mxu0 0.0
        %1215 = vmatpush.msra.mxu0 0.0
        %1216 = vmatpush.msra.mxu0 0.0
        %1217 = vmatpush.msra.mxu0 0.0
        %1218 = vmatpush.msra.mxu0 0.0
        %1219 = vmatpush.msra.mxu0 0.0
        %1220 = vmatpush.msra.mxu0 0.0
        %1221 = vmatpush.msra.mxu0 %v1147
        %1222 = vmatmul.f32.gmra.mxu0 %v1144
        %v1223 = vpop.f32.mrf.mxu0
        %v1224 = vadd.f32 %v1142, %v1223
        %1225 = vdwg.mxu0
        %1226 = vmatpush.msra.mxu0 0.0
        %1227 = vmatpush.msra.mxu0 0.0
        %1228 = vmatpush.msra.mxu0 0.0
        %1229 = vmatpush.msra.mxu0 0.0
        %1230 = vmatpush.msra.mxu0 0.0
        %1231 = vmatpush.msra.mxu0 0.0
        %1232 = vmatpush.msra.mxu0 0.0
        %1233 = vmatpush.msra.mxu0 0.0
        %1234 = vmatpush.msra.mxu0 0.0
        %1235 = vmatpush.msra.mxu0 0.0
        %1236 = vmatpush.msra.mxu0 0.0
        %1237 = vmatpush.msra.mxu0 0.0
        %1238 = vmatpush.msra.mxu0 0.0
        %1239 = vmatpush.msra.mxu0 0.0
        %1240 = vmatpush.msra.mxu0 0.0
        %1241 = vmatpush.msra.mxu0 %v1150
        %1242 = vmatmul.f32.gmra.mxu0 %v1144
        %v1243 = vpop.f32.mrf.mxu0
        %v1244 = vadd.f32 %v1142, %v1243
        %1245 = vdwg.mxu0
        %1246 = vmatpush.msra.mxu0 0.0
        %1247 = vmatpush.msra.mxu0 0.0
        %1248 = vmatpush.msra.mxu0 0.0
        %1249 = vmatpush.msra.mxu0 0.0
        %1250 = vmatpush.msra.mxu0 0.0
        %1251 = vmatpush.msra.mxu0 0.0
        %1252 = vmatpush.msra.mxu0 0.0
        %1253 = vmatpush.msra.mxu0 0.0
        %1254 = vmatpush.msra.mxu0 0.0
        %1255 = vmatpush.msra.mxu0 0.0
        %1256 = vmatpush.msra.mxu0 0.0
        %1257 = vmatpush.msra.mxu0 0.0
        %1258 = vmatpush.msra.mxu0 0.0
        %1259 = vmatpush.msra.mxu0 0.0
        %1260 = vmatpush.msra.mxu0 0.0
        %1261 = vmatpush.msra.mxu0 %v1153
        %1262 = vmatmul.f32.gmra.mxu0 %v1144
        %v1263 = vpop.f32.mrf.mxu0
        %v1264 = vadd.f32 %v1142, %v1263
        %1265 = vdwg.mxu0
        %1266 = vmatpush.msra.mxu0 0.0
        %1267 = vmatpush.msra.mxu0 0.0
        %1268 = vmatpush.msra.mxu0 0.0
        %1269 = vmatpush.msra.mxu0 0.0
        %1270 = vmatpush.msra.mxu0 0.0
        %1271 = vmatpush.msra.mxu0 0.0
        %1272 = vmatpush.msra.mxu0 0.0
        %1273 = vmatpush.msra.mxu0 0.0
        %1274 = vmatpush.msra.mxu0 0.0
        %1275 = vmatpush.msra.mxu0 0.0
        %1276 = vmatpush.msra.mxu0 0.0
        %1277 = vmatpush.msra.mxu0 0.0
        %1278 = vmatpush.msra.mxu0 0.0
        %1279 = vmatpush.msra.mxu0 0.0
        %1280 = vmatpush.msra.mxu0 0.0
        %1281 = vmatpush.msra.mxu0 %v1156
        %1282 = vmatmul.f32.gmra.mxu0 %v1144
        %v1283 = vpop.f32.mrf.mxu0
        %v1284 = vadd.f32 %v1142, %v1283
        %1285 = vdwg.mxu0
        %1286 = vmatpush.msra.mxu0 0.0
        %1287 = vmatpush.msra.mxu0 0.0
        %1288 = vmatpush.msra.mxu0 0.0
        %1289 = vmatpush.msra.mxu0 0.0
        %1290 = vmatpush.msra.mxu0 0.0
        %1291 = vmatpush.msra.mxu0 0.0
        %1292 = vmatpush.msra.mxu0 0.0
        %1293 = vmatpush.msra.mxu0 0.0
        %1294 = vmatpush.msra.mxu0 0.0
        %1295 = vmatpush.msra.mxu0 0.0
        %1296 = vmatpush.msra.mxu0 0.0
        %1297 = vmatpush.msra.mxu0 0.0
        %1298 = vmatpush.msra.mxu0 0.0
        %1299 = vmatpush.msra.mxu0 0.0
        %1300 = vmatpush.msra.mxu0 0.0
        %1301 = vmatpush.msra.mxu0 %v1159
        %1302 = vmatmul.f32.gmra.mxu0 %v1144
        %v1303 = vpop.f32.mrf.mxu0
        %v1304 = vadd.f32 %v1142, %v1303
        %1305 = vdwg.mxu0
        %1306 = vmatpush.msra.mxu0 0.0
        %1307 = vmatpush.msra.mxu0 0.0
        %1308 = vmatpush.msra.mxu0 0.0
        %1309 = vmatpush.msra.mxu0 0.0
        %1310 = vmatpush.msra.mxu0 0.0
        %1311 = vmatpush.msra.mxu0 0.0
        %1312 = vmatpush.msra.mxu0 0.0
        %1313 = vmatpush.msra.mxu0 0.0
        %1314 = vmatpush.msra.mxu0 0.0
        %1315 = vmatpush.msra.mxu0 0.0
        %1316 = vmatpush.msra.mxu0 0.0
        %1317 = vmatpush.msra.mxu0 0.0
        %1318 = vmatpush.msra.mxu0 0.0
        %1319 = vmatpush.msra.mxu0 0.0
        %1320 = vmatpush.msra.mxu0 0.0
        %1321 = vmatpush.msra.mxu0 %v1162
        %1322 = vmatmul.f32.gmra.mxu0 %v1144
        %v1323 = vpop.f32.mrf.mxu0
        %v1324 = vadd.f32 %v1142, %v1323
        %1325 = vdwg.mxu0
        %1326 = vmatpush.msra.mxu0 0.0
        %1327 = vmatpush.msra.mxu0 0.0
        %1328 = vmatpush.msra.mxu0 0.0
        %1329 = vmatpush.msra.mxu0 0.0
        %1330 = vmatpush.msra.mxu0 0.0
        %1331 = vmatpush.msra.mxu0 0.0
        %1332 = vmatpush.msra.mxu0 0.0
        %1333 = vmatpush.msra.mxu0 0.0
        %1334 = vmatpush.msra.mxu0 0.0
        %1335 = vmatpush.msra.mxu0 0.0
        %1336 = vmatpush.msra.mxu0 0.0
        %1337 = vmatpush.msra.mxu0 0.0
        %1338 = vmatpush.msra.mxu0 0.0
        %1339 = vmatpush.msra.mxu0 0.0
        %1340 = vmatpush.msra.mxu0 0.0
        %1341 = vmatpush.msra.mxu0 %v1165
        %1342 = vmatmul.f32.gmra.mxu0 %v1144
        %v1343 = vpop.f32.mrf.mxu0
        %v1344 = vadd.f32 %v1142, %v1343
        %1345 = vdwg.mxu0
        %1346 = vmatpush.msra.mxu0 0.0
        %1347 = vmatpush.msra.mxu0 0.0
        %1348 = vmatpush.msra.mxu0 0.0
        %1349 = vmatpush.msra.mxu0 0.0
        %1350 = vmatpush.msra.mxu0 0.0
        %1351 = vmatpush.msra.mxu0 0.0
        %1352 = vmatpush.msra.mxu0 0.0
        %1353 = vmatpush.msra.mxu0 0.0
        %1354 = vmatpush.msra.mxu0 0.0
        %1355 = vmatpush.msra.mxu0 0.0
        %1356 = vmatpush.msra.mxu0 0.0
        %1357 = vmatpush.msra.mxu0 0.0
        %1358 = vmatpush.msra.mxu0 0.0
        %1359 = vmatpush.msra.mxu0 0.0
        %1360 = vmatpush.msra.mxu0 0.0
        %1361 = vmatpush.msra.mxu0 %v1168
        %1362 = vmatmul.f32.gmra.mxu0 %v1144
        %v1363 = vpop.f32.mrf.mxu0
        %v1364 = vadd.f32 %v1142, %v1363
        %1365 = vdwg.mxu0
        %1366 = vmatpush.msra.mxu0 0.0
        %1367 = vmatpush.msra.mxu0 0.0
        %1368 = vmatpush.msra.mxu0 0.0
        %1369 = vmatpush.msra.mxu0 0.0
        %1370 = vmatpush.msra.mxu0 0.0
        %1371 = vmatpush.msra.mxu0 0.0
        %1372 = vmatpush.msra.mxu0 0.0
        %1373 = vmatpush.msra.mxu0 0.0
        %1374 = vmatpush.msra.mxu0 0.0
        %1375 = vmatpush.msra.mxu0 0.0
        %1376 = vmatpush.msra.mxu0 0.0
        %1377 = vmatpush.msra.mxu0 0.0
        %1378 = vmatpush.msra.mxu0 0.0
        %1379 = vmatpush.msra.mxu0 0.0
        %1380 = vmatpush.msra.mxu0 0.0
        %1381 = vmatpush.msra.mxu0 %v1171
        %1382 = vmatmul.f32.gmra.mxu0 %v1144
        %v1383 = vpop.f32.mrf.mxu0
        %v1384 = vadd.f32 %v1142, %v1383
        %1385 = vdwg.mxu0
        %1386 = vmatpush.msra.mxu0 0.0
        %1387 = vmatpush.msra.mxu0 0.0
        %1388 = vmatpush.msra.mxu0 0.0
        %1389 = vmatpush.msra.mxu0 0.0
        %1390 = vmatpush.msra.mxu0 0.0
        %1391 = vmatpush.msra.mxu0 0.0
        %1392 = vmatpush.msra.mxu0 0.0
        %1393 = vmatpush.msra.mxu0 0.0
        %1394 = vmatpush.msra.mxu0 0.0
        %1395 = vmatpush.msra.mxu0 0.0
        %1396 = vmatpush.msra.mxu0 0.0
        %1397 = vmatpush.msra.mxu0 0.0
        %1398 = vmatpush.msra.mxu0 0.0
        %1399 = vmatpush.msra.mxu0 0.0
        %1400 = vmatpush.msra.mxu0 0.0
        %1401 = vmatpush.msra.mxu0 %v1174
        %1402 = vmatmul.f32.gmra.mxu0 %v1144
        %v1403 = vpop.f32.mrf.mxu0
        %v1404 = vadd.f32 %v1142, %v1403
        %1405 = vdwg.mxu0
        %1406 = vmatpush.msra.mxu0 0.0
        %1407 = vmatpush.msra.mxu0 0.0
        %1408 = vmatpush.msra.mxu0 0.0
        %1409 = vmatpush.msra.mxu0 0.0
        %1410 = vmatpush.msra.mxu0 0.0
        %1411 = vmatpush.msra.mxu0 0.0
        %1412 = vmatpush.msra.mxu0 0.0
        %1413 = vmatpush.msra.mxu0 0.0
        %1414 = vmatpush.msra.mxu0 0.0
        %1415 = vmatpush.msra.mxu0 0.0
        %1416 = vmatpush.msra.mxu0 0.0
        %1417 = vmatpush.msra.mxu0 0.0
        %1418 = vmatpush.msra.mxu0 0.0
        %1419 = vmatpush.msra.mxu0 0.0
        %1420 = vmatpush.msra.mxu0 0.0
        %1421 = vmatpush.msra.mxu0 %v1177
        %1422 = vmatmul.f32.gmra.mxu0 %v1144
        %v1423 = vpop.f32.mrf.mxu0
        %v1424 = vadd.f32 %v1142, %v1423
        %1425 = vdwg.mxu0
        %1426 = vmatpush.msra.mxu0 0.0
        %1427 = vmatpush.msra.mxu0 0.0
        %1428 = vmatpush.msra.mxu0 0.0
        %1429 = vmatpush.msra.mxu0 0.0
        %1430 = vmatpush.msra.mxu0 0.0
        %1431 = vmatpush.msra.mxu0 0.0
        %1432 = vmatpush.msra.mxu0 0.0
        %1433 = vmatpush.msra.mxu0 0.0
        %1434 = vmatpush.msra.mxu0 0.0
        %1435 = vmatpush.msra.mxu0 0.0
        %1436 = vmatpush.msra.mxu0 0.0
        %1437 = vmatpush.msra.mxu0 0.0
        %1438 = vmatpush.msra.mxu0 0.0
        %1439 = vmatpush.msra.mxu0 0.0
        %1440 = vmatpush.msra.mxu0 0.0
        %1441 = vmatpush.msra.mxu0 %v1180
        %1442 = vmatmul.f32.gmra.mxu0 %v1144
        %v1443 = vpop.f32.mrf.mxu0
        %v1444 = vadd.f32 %v1142, %v1443
        %1445 = vdwg.mxu0
        %1446 = vmatpush.msra.mxu0 0.0
        %1447 = vmatpush.msra.mxu0 0.0
        %1448 = vmatpush.msra.mxu0 0.0
        %1449 = vmatpush.msra.mxu0 0.0
        %1450 = vmatpush.msra.mxu0 0.0
        %1451 = vmatpush.msra.mxu0 0.0
        %1452 = vmatpush.msra.mxu0 0.0
        %1453 = vmatpush.msra.mxu0 0.0
        %1454 = vmatpush.msra.mxu0 0.0
        %1455 = vmatpush.msra.mxu0 0.0
        %1456 = vmatpush.msra.mxu0 0.0
        %1457 = vmatpush.msra.mxu0 0.0
        %1458 = vmatpush.msra.mxu0 0.0
        %1459 = vmatpush.msra.mxu0 0.0
        %1460 = vmatpush.msra.mxu0 0.0
        %1461 = vmatpush.msra.mxu0 %v1183
        %1462 = vmatmul.f32.gmra.mxu0 %v1144
        %v1463 = vpop.f32.mrf.mxu0
        %v1464 = vadd.f32 %v1142, %v1463
        %1465 = vdwg.mxu0
        %1466 = vmatpush.msra.mxu0 0.0
        %1467 = vmatpush.msra.mxu0 0.0
        %1468 = vmatpush.msra.mxu0 0.0
        %1469 = vmatpush.msra.mxu0 0.0
        %1470 = vmatpush.msra.mxu0 0.0
        %1471 = vmatpush.msra.mxu0 0.0
        %1472 = vmatpush.msra.mxu0 0.0
        %1473 = vmatpush.msra.mxu0 0.0
        %1474 = vmatpush.msra.mxu0 0.0
        %1475 = vmatpush.msra.mxu0 0.0
        %1476 = vmatpush.msra.mxu0 0.0
        %1477 = vmatpush.msra.mxu0 0.0
        %1478 = vmatpush.msra.mxu0 0.0
        %1479 = vmatpush.msra.mxu0 0.0
        %1480 = vmatpush.msra.mxu0 0.0
        %1481 = vmatpush.msra.mxu0 %v1186
        %1482 = vmatmul.f32.gmra.mxu0 %v1144
        %v1483 = vpop.f32.mrf.mxu0
        %v1484 = vadd.f32 %v1142, %v1483
        %1485 = vdwg.mxu0
        %1486 = vmatpush.msra.mxu0 0.0
        %1487 = vmatpush.msra.mxu0 0.0
        %1488 = vmatpush.msra.mxu0 0.0
        %1489 = vmatpush.msra.mxu0 0.0
        %1490 = vmatpush.msra.mxu0 0.0
        %1491 = vmatpush.msra.mxu0 0.0
        %1492 = vmatpush.msra.mxu0 0.0
        %1493 = vmatpush.msra.mxu0 0.0
        %1494 = vmatpush.msra.mxu0 0.0
        %1495 = vmatpush.msra.mxu0 0.0
        %1496 = vmatpush.msra.mxu0 0.0
        %1497 = vmatpush.msra.mxu0 0.0
        %1498 = vmatpush.msra.mxu0 0.0
        %1499 = vmatpush.msra.mxu0 0.0
        %1500 = vmatpush.msra.mxu0 0.0
        %1501 = vmatpush.msra.mxu0 %v1189
        %1502 = vmatmul.f32.gmra.mxu0 %v1144
        %v1503 = vpop.f32.mrf.mxu0
        %v1504 = vadd.f32 %v1142, %v1503
        %1505 = vdwg.mxu0
        %1506 = vmatpush.msra.mxu0 0.0
        %1507 = vmatpush.msra.mxu0 0.0
        %1508 = vmatpush.msra.mxu0 0.0
        %1509 = vmatpush.msra.mxu0 0.0
        %1510 = vmatpush.msra.mxu0 0.0
        %1511 = vmatpush.msra.mxu0 0.0
        %1512 = vmatpush.msra.mxu0 0.0
        %1513 = vmatpush.msra.mxu0 0.0
        %1514 = vmatpush.msra.mxu0 0.0
        %1515 = vmatpush.msra.mxu0 0.0
        %1516 = vmatpush.msra.mxu0 0.0
        %1517 = vmatpush.msra.mxu0 0.0
        %1518 = vmatpush.msra.mxu0 0.0
        %1519 = vmatpush.msra.mxu0 0.0
        %1520 = vmatpush.msra.mxu0 0.0
        %1521 = vmatpush.msra.mxu0 %v1192
        %1522 = vmatmul.f32.gmra.mxu0 %v1144
        %v1523 = vpop.f32.mrf.mxu0
        %v1524 = vadd.f32 %v1142, %v1523
        %1525 = vdwg.mxu0
        %1526 = vmatpush.msra.mxu0 0.0
        %1527 = vmatpush.msra.mxu0 0.0
        %1528 = vmatpush.msra.mxu0 0.0
        %1529 = vmatpush.msra.mxu0 0.0
        %1530 = vmatpush.msra.mxu0 0.0
        %1531 = vmatpush.msra.mxu0 0.0
        %1532 = vmatpush.msra.mxu0 0.0
        %1533 = vmatpush.msra.mxu0 0.0
        %1534 = vmatpush.msra.mxu0 0.0
        %1535 = vmatpush.msra.mxu0 0.0
        %1536 = vmatpush.msra.mxu0 0.0
        %1537 = vmatpush.msra.mxu0 0.0
        %1538 = vmatpush.msra.mxu0 0.0
        %1539 = vmatpush.msra.mxu0 0.0
        %1540 = vmatpush.msra.mxu0 0.0
        %1541 = vmatpush.msra.mxu0 %v1195
        %1542 = vmatmul.f32.gmra.mxu0 %v1144
        %v1543 = vpop.f32.mrf.mxu0
        %v1544 = vadd.f32 %v1142, %v1543
        %1545 = vdwg.mxu0
        %1546 = vmatpush.msra.mxu0 0.0
        %1547 = vmatpush.msra.mxu0 0.0
        %1548 = vmatpush.msra.mxu0 0.0
        %1549 = vmatpush.msra.mxu0 0.0
        %1550 = vmatpush.msra.mxu0 0.0
        %1551 = vmatpush.msra.mxu0 0.0
        %1552 = vmatpush.msra.mxu0 0.0
        %1553 = vmatpush.msra.mxu0 0.0
        %1554 = vmatpush.msra.mxu0 0.0
        %1555 = vmatpush.msra.mxu0 0.0
        %1556 = vmatpush.msra.mxu0 0.0
        %1557 = vmatpush.msra.mxu0 0.0
        %1558 = vmatpush.msra.mxu0 0.0
        %1559 = vmatpush.msra.mxu0 0.0
        %1560 = vmatpush.msra.mxu0 0.0
        %1561 = vmatpush.msra.mxu0 %v1198
        %1562 = vmatmul.f32.gmra.mxu0 %v1144
        %v1563 = vpop.f32.mrf.mxu0
        %v1564 = vadd.f32 %v1142, %v1563
        %1565 = vdwg.mxu0
        %1566 = vmatpush.msra.mxu0 0.0
        %1567 = vmatpush.msra.mxu0 0.0
        %1568 = vmatpush.msra.mxu0 0.0
        %1569 = vmatpush.msra.mxu0 0.0
        %1570 = vmatpush.msra.mxu0 0.0
        %1571 = vmatpush.msra.mxu0 0.0
        %1572 = vmatpush.msra.mxu0 0.0
        %1573 = vmatpush.msra.mxu0 0.0
        %1574 = vmatpush.msra.mxu0 0.0
        %1575 = vmatpush.msra.mxu0 0.0
        %1576 = vmatpush.msra.mxu0 0.0
        %1577 = vmatpush.msra.mxu0 0.0
        %1578 = vmatpush.msra.mxu0 0.0
        %1579 = vmatpush.msra.mxu0 0.0
        %1580 = vmatpush.msra.mxu0 0.0
        %1581 = vmatpush.msra.mxu0 %v1201
        %1582 = vmatmul.f32.gmra.mxu0 %v1144
        %v1583 = vpop.f32.mrf.mxu0
        %v1584 = vadd.f32 %v1142, %v1583
        %1585 = vdwg.mxu0
        %1586 = vmatpush.msra.mxu0 0.0
        %1587 = vmatpush.msra.mxu0 0.0
        %1588 = vmatpush.msra.mxu0 0.0
        %1589 = vmatpush.msra.mxu0 0.0
        %1590 = vmatpush.msra.mxu0 0.0
        %1591 = vmatpush.msra.mxu0 0.0
        %1592 = vmatpush.msra.mxu0 0.0
        %1593 = vmatpush.msra.mxu0 0.0
        %1594 = vmatpush.msra.mxu0 0.0
        %1595 = vmatpush.msra.mxu0 0.0
        %1596 = vmatpush.msra.mxu0 0.0
        %1597 = vmatpush.msra.mxu0 0.0
        %1598 = vmatpush.msra.mxu0 0.0
        %1599 = vmatpush.msra.mxu0 0.0
        %1600 = vmatpush.msra.mxu0 0.0
        %1601 = vmatpush.msra.mxu0 %v1204
        %1602 = vmatmul.f32.gmra.mxu0 %v1144
        %v1603 = vpop.f32.mrf.mxu0
        %v1604 = vadd.f32 %v1142, %v1603
        %1605 = vdwg.mxu0
        %v1606 = vmax.f32 %v1224, 0.0
        %v1607 = vmax.f32 %v1244, 0.0
        %v1608 = vmax.f32 %v1264, 0.0
        %v1609 = vmax.f32 %v1284, 0.0
        %v1610 = vmax.f32 %v1304, 0.0
        %v1611 = vmax.f32 %v1324, 0.0
        %v1612 = vmax.f32 %v1344, 0.0
        %v1613 = vmax.f32 %v1364, 0.0
        %v1614 = vmax.f32 %v1384, 0.0
        %v1615 = vmax.f32 %v1404, 0.0
        %v1616 = vmax.f32 %v1424, 0.0
        %v1617 = vmax.f32 %v1444, 0.0
        %v1618 = vmax.f32 %v1464, 0.0
        %v1619 = vmax.f32 %v1484, 0.0
        %v1620 = vmax.f32 %v1504, 0.0
        %v1621 = vmax.f32 %v1524, 0.0
        %v1622 = vmax.f32 %v1544, 0.0
        %v1623 = vmax.f32 %v1564, 0.0
        %v1624 = vmax.f32 %v1584, 0.0
        %v1625 = vmax.f32 %v1604, 0.0
        %1627 = vset.pattern.permute.xlu0 8
        %1628 = vperm.xlu0 %1627, %v255
        %v1629 = vpop.permute.xlu0 %1628
        %1632 = vset.pattern.permute.xlu0 8
        %1633 = vperm.xlu0 %1632, %v256
        %v1634 = vpop.permute.xlu0 %1633
        %v1636 = vsel %vm262, %v255, 0
        %v1638 = vsel %vm262, %v256, 0
        %1640 = vmatpush.msra.mxu0 0.0
        %1641 = vmatpush.msra.mxu0 0.0
        %1642 = vmatpush.msra.mxu0 0.0
        %1643 = vmatpush.msra.mxu0 0.0
        %1644 = vmatpush.msra.mxu0 0.0
        %1645 = vmatpush.msra.mxu0 0.0
        %1646 = vmatpush.msra.mxu0 0.0
        %1647 = vmatpush.msra.mxu0 0.0
        %1648 = vmatpush.msra.mxu0 0.0
        %1649 = vmatpush.msra.mxu0 0.0
        %1650 = vmatpush.msra.mxu0 0.0
        %1651 = vmatpush.msra.mxu0 0.0
        %1652 = vmatpush.msra.mxu0 0.0
        %1653 = vmatpush.msra.mxu0 0.0
        %1654 = vmatpush.msra.mxu0 0.0
        %1655 = vmatpush.msra.mxu0 %v1606
        %1656 = vmatmul.f32.gmra.mxu0 %v1636
        %v1657 = vpop.f32.mrf.mxu0
        %v1658 = vadd.f32 %v1629, %v1657
        %1659 = vmatmul.f32.gmra.mxu0 %v1638
        %v1660 = vpop.f32.mrf.mxu0
        %v1661 = vadd.f32 %v1634, %v1660
        %1662 = vdwg.mxu0
        %1663 = vmatpush.msra.mxu0 0.0
        %1664 = vmatpush.msra.mxu0 0.0
        %1665 = vmatpush.msra.mxu0 0.0
        %1666 = vmatpush.msra.mxu0 0.0
        %1667 = vmatpush.msra.mxu0 0.0
        %1668 = vmatpush.msra.mxu0 0.0
        %1669 = vmatpush.msra.mxu0 0.0
        %1670 = vmatpush.msra.mxu0 0.0
        %1671 = vmatpush.msra.mxu0 0.0
        %1672 = vmatpush.msra.mxu0 0.0
        %1673 = vmatpush.msra.mxu0 0.0
        %1674 = vmatpush.msra.mxu0 0.0
        %1675 = vmatpush.msra.mxu0 0.0
        %1676 = vmatpush.msra.mxu0 0.0
        %1677 = vmatpush.msra.mxu0 0.0
        %1678 = vmatpush.msra.mxu0 %v1607
        %1679 = vmatmul.f32.gmra.mxu0 %v1636
        %v1680 = vpop.f32.mrf.mxu0
        %v1681 = vadd.f32 %v1629, %v1680
        %1682 = vmatmul.f32.gmra.mxu0 %v1638
        %v1683 = vpop.f32.mrf.mxu0
        %v1684 = vadd.f32 %v1634, %v1683
        %1685 = vdwg.mxu0
        %1686 = vmatpush.msra.mxu0 0.0
        %1687 = vmatpush.msra.mxu0 0.0
        %1688 = vmatpush.msra.mxu0 0.0
        %1689 = vmatpush.msra.mxu0 0.0
        %1690 = vmatpush.msra.mxu0 0.0
        %1691 = vmatpush.msra.mxu0 0.0
        %1692 = vmatpush.msra.mxu0 0.0
        %1693 = vmatpush.msra.mxu0 0.0
        %1694 = vmatpush.msra.mxu0 0.0
        %1695 = vmatpush.msra.mxu0 0.0
        %1696 = vmatpush.msra.mxu0 0.0
        %1697 = vmatpush.msra.mxu0 0.0
        %1698 = vmatpush.msra.mxu0 0.0
        %1699 = vmatpush.msra.mxu0 0.0
        %1700 = vmatpush.msra.mxu0 0.0
        %1701 = vmatpush.msra.mxu0 %v1608
        %1702 = vmatmul.f32.gmra.mxu0 %v1636
        %v1703 = vpop.f32.mrf.mxu0
        %v1704 = vadd.f32 %v1629, %v1703
        %1705 = vmatmul.f32.gmra.mxu0 %v1638
        %v1706 = vpop.f32.mrf.mxu0
        %v1707 = vadd.f32 %v1634, %v1706
        %1708 = vdwg.mxu0
        %1709 = vmatpush.msra.mxu0 0.0
        %1710 = vmatpush.msra.mxu0 0.0
        %1711 = vmatpush.msra.mxu0 0.0
        %1712 = vmatpush.msra.mxu0 0.0
        %1713 = vmatpush.msra.mxu0 0.0
        %1714 = vmatpush.msra.mxu0 0.0
        %1715 = vmatpush.msra.mxu0 0.0
        %1716 = vmatpush.msra.mxu0 0.0
        %1717 = vmatpush.msra.mxu0 0.0
        %1718 = vmatpush.msra.mxu0 0.0
        %1719 = vmatpush.msra.mxu0 0.0
        %1720 = vmatpush.msra.mxu0 0.0
        %1721 = vmatpush.msra.mxu0 0.0
        %1722 = vmatpush.msra.mxu0 0.0
        %1723 = vmatpush.msra.mxu0 0.0
        %1724 = vmatpush.msra.mxu0 %v1609
        %1725 = vmatmul.f32.gmra.mxu0 %v1636
        %v1726 = vpop.f32.mrf.mxu0
        %v1727 = vadd.f32 %v1629, %v1726
        %1728 = vmatmul.f32.gmra.mxu0 %v1638
        %v1729 = vpop.f32.mrf.mxu0
        %v1730 = vadd.f32 %v1634, %v1729
        %1731 = vdwg.mxu0
        %1732 = vmatpush.msra.mxu0 0.0
        %1733 = vmatpush.msra.mxu0 0.0
        %1734 = vmatpush.msra.mxu0 0.0
        %1735 = vmatpush.msra.mxu0 0.0
        %1736 = vmatpush.msra.mxu0 0.0
        %1737 = vmatpush.msra.mxu0 0.0
        %1738 = vmatpush.msra.mxu0 0.0
        %1739 = vmatpush.msra.mxu0 0.0
        %1740 = vmatpush.msra.mxu0 0.0
        %1741 = vmatpush.msra.mxu0 0.0
        %1742 = vmatpush.msra.mxu0 0.0
        %1743 = vmatpush.msra.mxu0 0.0
        %1744 = vmatpush.msra.mxu0 0.0
        %1745 = vmatpush.msra.mxu0 0.0
        %1746 = vmatpush.msra.mxu0 0.0
        %1747 = vmatpush.msra.mxu0 %v1610
        %1748 = vmatmul.f32.gmra.mxu0 %v1636
        %v1749 = vpop.f32.mrf.mxu0
        %v1750 = vadd.f32 %v1629, %v1749
        %1751 = vmatmul.f32.gmra.mxu0 %v1638
        %v1752 = vpop.f32.mrf.mxu0
        %v1753 = vadd.f32 %v1634, %v1752
        %1754 = vdwg.mxu0
        %1755 = vmatpush.msra.mxu0 0.0
        %1756 = vmatpush.msra.mxu0 0.0
        %1757 = vmatpush.msra.mxu0 0.0
        %1758 = vmatpush.msra.mxu0 0.0
        %1759 = vmatpush.msra.mxu0 0.0
        %1760 = vmatpush.msra.mxu0 0.0
        %1761 = vmatpush.msra.mxu0 0.0
        %1762 = vmatpush.msra.mxu0 0.0
        %1763 = vmatpush.msra.mxu0 0.0
        %1764 = vmatpush.msra.mxu0 0.0
        %1765 = vmatpush.msra.mxu0 0.0
        %1766 = vmatpush.msra.mxu0 0.0
        %1767 = vmatpush.msra.mxu0 0.0
        %1768 = vmatpush.msra.mxu0 0.0
        %1769 = vmatpush.msra.mxu0 0.0
        %1770 = vmatpush.msra.mxu0 %v1611
        %1771 = vmatmul.f32.gmra.mxu0 %v1636
        %v1772 = vpop.f32.mrf.mxu0
        %v1773 = vadd.f32 %v1629, %v1772
        %1774 = vmatmul.f32.gmra.mxu0 %v1638
        %v1775 = vpop.f32.mrf.mxu0
        %v1776 = vadd.f32 %v1634, %v1775
        %1777 = vdwg.mxu0
        %1778 = vmatpush.msra.mxu0 0.0
        %1779 = vmatpush.msra.mxu0 0.0
        %1780 = vmatpush.msra.mxu0 0.0
        %1781 = vmatpush.msra.mxu0 0.0
        %1782 = vmatpush.msra.mxu0 0.0
        %1783 = vmatpush.msra.mxu0 0.0
        %1784 = vmatpush.msra.mxu0 0.0
        %1785 = vmatpush.msra.mxu0 0.0
        %1786 = vmatpush.msra.mxu0 0.0
        %1787 = vmatpush.msra.mxu0 0.0
        %1788 = vmatpush.msra.mxu0 0.0
        %1789 = vmatpush.msra.mxu0 0.0
        %1790 = vmatpush.msra.mxu0 0.0
        %1791 = vmatpush.msra.mxu0 0.0
        %1792 = vmatpush.msra.mxu0 0.0
        %1793 = vmatpush.msra.mxu0 %v1612
        %1794 = vmatmul.f32.gmra.mxu0 %v1636
        %v1795 = vpop.f32.mrf.mxu0
        %v1796 = vadd.f32 %v1629, %v1795
        %1797 = vmatmul.f32.gmra.mxu0 %v1638
        %v1798 = vpop.f32.mrf.mxu0
        %v1799 = vadd.f32 %v1634, %v1798
        %1800 = vdwg.mxu0
        %1801 = vmatpush.msra.mxu0 0.0
        %1802 = vmatpush.msra.mxu0 0.0
        %1803 = vmatpush.msra.mxu0 0.0
        %1804 = vmatpush.msra.mxu0 0.0
        %1805 = vmatpush.msra.mxu0 0.0
        %1806 = vmatpush.msra.mxu0 0.0
        %1807 = vmatpush.msra.mxu0 0.0
        %1808 = vmatpush.msra.mxu0 0.0
        %1809 = vmatpush.msra.mxu0 0.0
        %1810 = vmatpush.msra.mxu0 0.0
        %1811 = vmatpush.msra.mxu0 0.0
        %1812 = vmatpush.msra.mxu0 0.0
        %1813 = vmatpush.msra.mxu0 0.0
        %1814 = vmatpush.msra.mxu0 0.0
        %1815 = vmatpush.msra.mxu0 0.0
        %1816 = vmatpush.msra.mxu0 %v1613
        %1817 = vmatmul.f32.gmra.mxu0 %v1636
        %v1818 = vpop.f32.mrf.mxu0
        %v1819 = vadd.f32 %v1629, %v1818
        %1820 = vmatmul.f32.gmra.mxu0 %v1638
        %v1821 = vpop.f32.mrf.mxu0
        %v1822 = vadd.f32 %v1634, %v1821
        %1823 = vdwg.mxu0
        %1824 = vmatpush.msra.mxu0 0.0
        %1825 = vmatpush.msra.mxu0 0.0
        %1826 = vmatpush.msra.mxu0 0.0
        %1827 = vmatpush.msra.mxu0 0.0
        %1828 = vmatpush.msra.mxu0 0.0
        %1829 = vmatpush.msra.mxu0 0.0
        %1830 = vmatpush.msra.mxu0 0.0
        %1831 = vmatpush.msra.mxu0 0.0
        %1832 = vmatpush.msra.mxu0 0.0
        %1833 = vmatpush.msra.mxu0 0.0
        %1834 = vmatpush.msra.mxu0 0.0
        %1835 = vmatpush.msra.mxu0 0.0
        %1836 = vmatpush.msra.mxu0 0.0
        %1837 = vmatpush.msra.mxu0 0.0
        %1838 = vmatpush.msra.mxu0 0.0
        %1839 = vmatpush.msra.mxu0 %v1614
        %1840 = vmatmul.f32.gmra.mxu0 %v1636
        %v1841 = vpop.f32.mrf.mxu0
        %v1842 = vadd.f32 %v1629, %v1841
        %1843 = vmatmul.f32.gmra.mxu0 %v1638
        %v1844 = vpop.f32.mrf.mxu0
        %v1845 = vadd.f32 %v1634, %v1844
        %1846 = vdwg.mxu0
        %1847 = vmatpush.msra.mxu0 0.0
        %1848 = vmatpush.msra.mxu0 0.0
        %1849 = vmatpush.msra.mxu0 0.0
        %1850 = vmatpush.msra.mxu0 0.0
        %1851 = vmatpush.msra.mxu0 0.0
        %1852 = vmatpush.msra.mxu0 0.0
        %1853 = vmatpush.msra.mxu0 0.0
        %1854 = vmatpush.msra.mxu0 0.0
        %1855 = vmatpush.msra.mxu0 0.0
        %1856 = vmatpush.msra.mxu0 0.0
        %1857 = vmatpush.msra.mxu0 0.0
        %1858 = vmatpush.msra.mxu0 0.0
        %1859 = vmatpush.msra.mxu0 0.0
        %1860 = vmatpush.msra.mxu0 0.0
        %1861 = vmatpush.msra.mxu0 0.0
        %1862 = vmatpush.msra.mxu0 %v1615
        %1863 = vmatmul.f32.gmra.mxu0 %v1636
        %v1864 = vpop.f32.mrf.mxu0
        %v1865 = vadd.f32 %v1629, %v1864
        %1866 = vmatmul.f32.gmra.mxu0 %v1638
        %v1867 = vpop.f32.mrf.mxu0
        %v1868 = vadd.f32 %v1634, %v1867
        %1869 = vdwg.mxu0
        %1870 = vmatpush.msra.mxu0 0.0
        %1871 = vmatpush.msra.mxu0 0.0
        %1872 = vmatpush.msra.mxu0 0.0
        %1873 = vmatpush.msra.mxu0 0.0
        %1874 = vmatpush.msra.mxu0 0.0
        %1875 = vmatpush.msra.mxu0 0.0
        %1876 = vmatpush.msra.mxu0 0.0
        %1877 = vmatpush.msra.mxu0 0.0
        %1878 = vmatpush.msra.mxu0 0.0
        %1879 = vmatpush.msra.mxu0 0.0
        %1880 = vmatpush.msra.mxu0 0.0
        %1881 = vmatpush.msra.mxu0 0.0
        %1882 = vmatpush.msra.mxu0 0.0
        %1883 = vmatpush.msra.mxu0 0.0
        %1884 = vmatpush.msra.mxu0 0.0
        %1885 = vmatpush.msra.mxu0 %v1616
        %1886 = vmatmul.f32.gmra.mxu0 %v1636
        %v1887 = vpop.f32.mrf.mxu0
        %v1888 = vadd.f32 %v1629, %v1887
        %1889 = vmatmul.f32.gmra.mxu0 %v1638
        %v1890 = vpop.f32.mrf.mxu0
        %v1891 = vadd.f32 %v1634, %v1890
        %1892 = vdwg.mxu0
        %1893 = vmatpush.msra.mxu0 0.0
        %1894 = vmatpush.msra.mxu0 0.0
        %1895 = vmatpush.msra.mxu0 0.0
        %1896 = vmatpush.msra.mxu0 0.0
        %1897 = vmatpush.msra.mxu0 0.0
        %1898 = vmatpush.msra.mxu0 0.0
        %1899 = vmatpush.msra.mxu0 0.0
        %1900 = vmatpush.msra.mxu0 0.0
        %1901 = vmatpush.msra.mxu0 0.0
        %1902 = vmatpush.msra.mxu0 0.0
        %1903 = vmatpush.msra.mxu0 0.0
        %1904 = vmatpush.msra.mxu0 0.0
        %1905 = vmatpush.msra.mxu0 0.0
        %1906 = vmatpush.msra.mxu0 0.0
        %1907 = vmatpush.msra.mxu0 0.0
        %1908 = vmatpush.msra.mxu0 %v1617
        %1909 = vmatmul.f32.gmra.mxu0 %v1636
        %v1910 = vpop.f32.mrf.mxu0
        %v1911 = vadd.f32 %v1629, %v1910
        %1912 = vmatmul.f32.gmra.mxu0 %v1638
        %v1913 = vpop.f32.mrf.mxu0
        %v1914 = vadd.f32 %v1634, %v1913
        %1915 = vdwg.mxu0
        %1916 = vmatpush.msra.mxu0 0.0
        %1917 = vmatpush.msra.mxu0 0.0
        %1918 = vmatpush.msra.mxu0 0.0
        %1919 = vmatpush.msra.mxu0 0.0
        %1920 = vmatpush.msra.mxu0 0.0
        %1921 = vmatpush.msra.mxu0 0.0
        %1922 = vmatpush.msra.mxu0 0.0
        %1923 = vmatpush.msra.mxu0 0.0
        %1924 = vmatpush.msra.mxu0 0.0
        %1925 = vmatpush.msra.mxu0 0.0
        %1926 = vmatpush.msra.mxu0 0.0
        %1927 = vmatpush.msra.mxu0 0.0
        %1928 = vmatpush.msra.mxu0 0.0
        %1929 = vmatpush.msra.mxu0 0.0
        %1930 = vmatpush.msra.mxu0 0.0
        %1931 = vmatpush.msra.mxu0 %v1618
        %1932 = vmatmul.f32.gmra.mxu0 %v1636
        %v1933 = vpop.f32.mrf.mxu0
        %v1934 = vadd.f32 %v1629, %v1933
        %1935 = vmatmul.f32.gmra.mxu0 %v1638
        %v1936 = vpop.f32.mrf.mxu0
        %v1937 = vadd.f32 %v1634, %v1936
        %1938 = vdwg.mxu0
        %1939 = vmatpush.msra.mxu0 0.0
        %1940 = vmatpush.msra.mxu0 0.0
        %1941 = vmatpush.msra.mxu0 0.0
        %1942 = vmatpush.msra.mxu0 0.0
        %1943 = vmatpush.msra.mxu0 0.0
        %1944 = vmatpush.msra.mxu0 0.0
        %1945 = vmatpush.msra.mxu0 0.0
        %1946 = vmatpush.msra.mxu0 0.0
        %1947 = vmatpush.msra.mxu0 0.0
        %1948 = vmatpush.msra.mxu0 0.0
        %1949 = vmatpush.msra.mxu0 0.0
        %1950 = vmatpush.msra.mxu0 0.0
        %1951 = vmatpush.msra.mxu0 0.0
        %1952 = vmatpush.msra.mxu0 0.0
        %1953 = vmatpush.msra.mxu0 0.0
        %1954 = vmatpush.msra.mxu0 %v1619
        %1955 = vmatmul.f32.gmra.mxu0 %v1636
        %v1956 = vpop.f32.mrf.mxu0
        %v1957 = vadd.f32 %v1629, %v1956
        %1958 = vmatmul.f32.gmra.mxu0 %v1638
        %v1959 = vpop.f32.mrf.mxu0
        %v1960 = vadd.f32 %v1634, %v1959
        %1961 = vdwg.mxu0
        %1962 = vmatpush.msra.mxu0 0.0
        %1963 = vmatpush.msra.mxu0 0.0
        %1964 = vmatpush.msra.mxu0 0.0
        %1965 = vmatpush.msra.mxu0 0.0
        %1966 = vmatpush.msra.mxu0 0.0
        %1967 = vmatpush.msra.mxu0 0.0
        %1968 = vmatpush.msra.mxu0 0.0
        %1969 = vmatpush.msra.mxu0 0.0
        %1970 = vmatpush.msra.mxu0 0.0
        %1971 = vmatpush.msra.mxu0 0.0
        %1972 = vmatpush.msra.mxu0 0.0
        %1973 = vmatpush.msra.mxu0 0.0
        %1974 = vmatpush.msra.mxu0 0.0
        %1975 = vmatpush.msra.mxu0 0.0
        %1976 = vmatpush.msra.mxu0 0.0
        %1977 = vmatpush.msra.mxu0 %v1620
        %1978 = vmatmul.f32.gmra.mxu0 %v1636
        %v1979 = vpop.f32.mrf.mxu0
        %v1980 = vadd.f32 %v1629, %v1979
        %1981 = vmatmul.f32.gmra.mxu0 %v1638
        %v1982 = vpop.f32.mrf.mxu0
        %v1983 = vadd.f32 %v1634, %v1982
        %1984 = vdwg.mxu0
        %1985 = vmatpush.msra.mxu0 0.0
        %1986 = vmatpush.msra.mxu0 0.0
        %1987 = vmatpush.msra.mxu0 0.0
        %1988 = vmatpush.msra.mxu0 0.0
        %1989 = vmatpush.msra.mxu0 0.0
        %1990 = vmatpush.msra.mxu0 0.0
        %1991 = vmatpush.msra.mxu0 0.0
        %1992 = vmatpush.msra.mxu0 0.0
        %1993 = vmatpush.msra.mxu0 0.0
        %1994 = vmatpush.msra.mxu0 0.0
        %1995 = vmatpush.msra.mxu0 0.0
        %1996 = vmatpush.msra.mxu0 0.0
        %1997 = vmatpush.msra.mxu0 0.0
        %1998 = vmatpush.msra.mxu0 0.0
        %1999 = vmatpush.msra.mxu0 0.0
        %2000 = vmatpush.msra.mxu0 %v1621
        %2001 = vmatmul.f32.gmra.mxu0 %v1636
        %v2002 = vpop.f32.mrf.mxu0
        %v2003 = vadd.f32 %v1629, %v2002
        %2004 = vmatmul.f32.gmra.mxu0 %v1638
        %v2005 = vpop.f32.mrf.mxu0
        %v2006 = vadd.f32 %v1634, %v2005
        %2007 = vdwg.mxu0
        %2008 = vmatpush.msra.mxu0 0.0
        %2009 = vmatpush.msra.mxu0 0.0
        %2010 = vmatpush.msra.mxu0 0.0
        %2011 = vmatpush.msra.mxu0 0.0
        %2012 = vmatpush.msra.mxu0 0.0
        %2013 = vmatpush.msra.mxu0 0.0
        %2014 = vmatpush.msra.mxu0 0.0
        %2015 = vmatpush.msra.mxu0 0.0
        %2016 = vmatpush.msra.mxu0 0.0
        %2017 = vmatpush.msra.mxu0 0.0
        %2018 = vmatpush.msra.mxu0 0.0
        %2019 = vmatpush.msra.mxu0 0.0
        %2020 = vmatpush.msra.mxu0 0.0
        %2021 = vmatpush.msra.mxu0 0.0
        %2022 = vmatpush.msra.mxu0 0.0
        %2023 = vmatpush.msra.mxu0 %v1622
        %2024 = vmatmul.f32.gmra.mxu0 %v1636
        %v2025 = vpop.f32.mrf.mxu0
        %v2026 = vadd.f32 %v1629, %v2025
        %2027 = vmatmul.f32.gmra.mxu0 %v1638
        %v2028 = vpop.f32.mrf.mxu0
        %v2029 = vadd.f32 %v1634, %v2028
        %2030 = vdwg.mxu0
        %2031 = vmatpush.msra.mxu0 0.0
        %2032 = vmatpush.msra.mxu0 0.0
        %2033 = vmatpush.msra.mxu0 0.0
        %2034 = vmatpush.msra.mxu0 0.0
        %2035 = vmatpush.msra.mxu0 0.0
        %2036 = vmatpush.msra.mxu0 0.0
        %2037 = vmatpush.msra.mxu0 0.0
        %2038 = vmatpush.msra.mxu0 0.0
        %2039 = vmatpush.msra.mxu0 0.0
        %2040 = vmatpush.msra.mxu0 0.0
        %2041 = vmatpush.msra.mxu0 0.0
        %2042 = vmatpush.msra.mxu0 0.0
        %2043 = vmatpush.msra.mxu0 0.0
        %2044 = vmatpush.msra.mxu0 0.0
        %2045 = vmatpush.msra.mxu0 0.0
        %2046 = vmatpush.msra.mxu0 %v1623
        %2047 = vmatmul.f32.gmra.mxu0 %v1636
        %v2048 = vpop.f32.mrf.mxu0
        %v2049 = vadd.f32 %v1629, %v2048
        %2050 = vmatmul.f32.gmra.mxu0 %v1638
        %v2051 = vpop.f32.mrf.mxu0
        %v2052 = vadd.f32 %v1634, %v2051
        %2053 = vdwg.mxu0
        %2054 = vmatpush.msra.mxu0 0.0
        %2055 = vmatpush.msra.mxu0 0.0
        %2056 = vmatpush.msra.mxu0 0.0
        %2057 = vmatpush.msra.mxu0 0.0
        %2058 = vmatpush.msra.mxu0 0.0
        %2059 = vmatpush.msra.mxu0 0.0
        %2060 = vmatpush.msra.mxu0 0.0
        %2061 = vmatpush.msra.mxu0 0.0
        %2062 = vmatpush.msra.mxu0 0.0
        %2063 = vmatpush.msra.mxu0 0.0
        %2064 = vmatpush.msra.mxu0 0.0
        %2065 = vmatpush.msra.mxu0 0.0
        %2066 = vmatpush.msra.mxu0 0.0
        %2067 = vmatpush.msra.mxu0 0.0
        %2068 = vmatpush.msra.mxu0 0.0
        %2069 = vmatpush.msra.mxu0 %v1624
        %2070 = vmatmul.f32.gmra.mxu0 %v1636
        %v2071 = vpop.f32.mrf.mxu0
        %v2072 = vadd.f32 %v1629, %v2071
        %2073 = vmatmul.f32.gmra.mxu0 %v1638
        %v2074 = vpop.f32.mrf.mxu0
        %v2075 = vadd.f32 %v1634, %v2074
        %2076 = vdwg.mxu0
        %2077 = vmatpush.msra.mxu0 0.0
        %2078 = vmatpush.msra.mxu0 0.0
        %2079 = vmatpush.msra.mxu0 0.0
        %2080 = vmatpush.msra.mxu0 0.0
        %2081 = vmatpush.msra.mxu0 0.0
        %2082 = vmatpush.msra.mxu0 0.0
        %2083 = vmatpush.msra.mxu0 0.0
        %2084 = vmatpush.msra.mxu0 0.0
        %2085 = vmatpush.msra.mxu0 0.0
        %2086 = vmatpush.msra.mxu0 0.0
        %2087 = vmatpush.msra.mxu0 0.0
        %2088 = vmatpush.msra.mxu0 0.0
        %2089 = vmatpush.msra.mxu0 0.0
        %2090 = vmatpush.msra.mxu0 0.0
        %2091 = vmatpush.msra.mxu0 0.0
        %2092 = vmatpush.msra.mxu0 %v1625
        %2093 = vmatmul.f32.gmra.mxu0 %v1636
        %v2094 = vpop.f32.mrf.mxu0
        %v2095 = vadd.f32 %v1629, %v2094
        %2096 = vmatmul.f32.gmra.mxu0 %v1638
        %v2097 = vpop.f32.mrf.mxu0
        %v2098 = vadd.f32 %v1634, %v2097
        %2099 = vdwg.mxu0
        %v2100 = vsub.f32 %v247, %v1658
        %v2101 = vsub.f32 %v248, %v1681
        %v2102 = vmul.f32 %v2100, %v2100
        %v2103 = vmul.f32 %v2101, %v2101
        %v2104 = vsub.f32 0.0, %v1661
        %v2105 = vsub.f32 0.0, %v1684
        %v2106 = vmul.f32 %v2104, 1.442695
        %v2107 = vpow.pop %v2106
        %v2108 = vmul.f32 %v2105, 1.442695
        %v2109 = vpow.pop %v2108
        %v2110 = vmul.f32 %v2102, %v2107
        %v2111 = vmul.f32 %v2103, %v2109
        %v2112 = vadd.f32 %v2110, %v1661
        %v2113 = vadd.f32 %v2111, %v1684
        %v2114 = vadd.f32 %v2112, 0.0
        %v2115 = vadd.f32 %v2113, 0.0
        %v2116 = vsub.f32 %v247, %v1704
        %v2117 = vsub.f32 %v248, %v1727
        %v2118 = vmul.f32 %v2116, %v2116
        %v2119 = vmul.f32 %v2117, %v2117
        %v2120 = vsub.f32 0.0, %v1707
        %v2121 = vsub.f32 0.0, %v1730
        %v2122 = vmul.f32 %v2120, 1.442695
        %v2123 = vpow.pop %v2122
        %v2124 = vmul.f32 %v2121, 1.442695
        %v2125 = vpow.pop %v2124
        %v2126 = vmul.f32 %v2118, %v2123
        %v2127 = vmul.f32 %v2119, %v2125
        %v2128 = vadd.f32 %v2126, %v1707
        %v2129 = vadd.f32 %v2127, %v1730
        %v2130 = vadd.f32 %v2114, %v2128
        %v2131 = vadd.f32 %v2115, %v2129
        %v2132 = vsub.f32 %v247, %v1750
        %v2133 = vsub.f32 %v248, %v1773
        %v2134 = vmul.f32 %v2132, %v2132
        %v2135 = vmul.f32 %v2133, %v2133
        %v2136 = vsub.f32 0.0, %v1753
        %v2137 = vsub.f32 0.0, %v1776
        %v2138 = vmul.f32 %v2136, 1.442695
        %v2139 = vpow.pop %v2138
        %v2140 = vmul.f32 %v2137, 1.442695
        %v2141 = vpow.pop %v2140
        %v2142 = vmul.f32 %v2134, %v2139
        %v2143 = vmul.f32 %v2135, %v2141
        %v2144 = vadd.f32 %v2142, %v1753
        %v2145 = vadd.f32 %v2143, %v1776
        %v2146 = vadd.f32 %v2130, %v2144
        %v2147 = vadd.f32 %v2131, %v2145
        %v2148 = vsub.f32 %v247, %v1796
        %v2149 = vsub.f32 %v248, %v1819
        %v2150 = vmul.f32 %v2148, %v2148
        %v2151 = vmul.f32 %v2149, %v2149
        %v2152 = vsub.f32 0.0, %v1799
        %v2153 = vsub.f32 0.0, %v1822
        %v2154 = vmul.f32 %v2152, 1.442695
        %v2155 = vpow.pop %v2154
        %v2156 = vmul.f32 %v2153, 1.442695
        %v2157 = vpow.pop %v2156
        %v2158 = vmul.f32 %v2150, %v2155
        %v2159 = vmul.f32 %v2151, %v2157
        %v2160 = vadd.f32 %v2158, %v1799
        %v2161 = vadd.f32 %v2159, %v1822
        %v2162 = vadd.f32 %v2146, %v2160
        %v2163 = vadd.f32 %v2147, %v2161
        %v2164 = vsub.f32 %v247, %v1842
        %v2165 = vsub.f32 %v248, %v1865
        %v2166 = vmul.f32 %v2164, %v2164
        %v2167 = vmul.f32 %v2165, %v2165
        %v2168 = vsub.f32 0.0, %v1845
        %v2169 = vsub.f32 0.0, %v1868
        %v2170 = vmul.f32 %v2168, 1.442695
        %v2171 = vpow.pop %v2170
        %v2172 = vmul.f32 %v2169, 1.442695
        %v2173 = vpow.pop %v2172
        %v2174 = vmul.f32 %v2166, %v2171
        %v2175 = vmul.f32 %v2167, %v2173
        %v2176 = vadd.f32 %v2174, %v1845
        %v2177 = vadd.f32 %v2175, %v1868
        %v2178 = vadd.f32 %v2162, %v2176
        %v2179 = vadd.f32 %v2163, %v2177
        %v2180 = vsub.f32 %v247, %v1888
        %v2181 = vsub.f32 %v248, %v1911
        %v2182 = vmul.f32 %v2180, %v2180
        %v2183 = vmul.f32 %v2181, %v2181
        %v2184 = vsub.f32 0.0, %v1891
        %v2185 = vsub.f32 0.0, %v1914
        %v2186 = vmul.f32 %v2184, 1.442695
        %v2187 = vpow.pop %v2186
        %v2188 = vmul.f32 %v2185, 1.442695
        %v2189 = vpow.pop %v2188
        %v2190 = vmul.f32 %v2182, %v2187
        %v2191 = vmul.f32 %v2183, %v2189
        %v2192 = vadd.f32 %v2190, %v1891
        %v2193 = vadd.f32 %v2191, %v1914
        %v2194 = vadd.f32 %v2178, %v2192
        %v2195 = vadd.f32 %v2179, %v2193
        %v2196 = vsub.f32 %v247, %v1934
        %v2197 = vsub.f32 %v248, %v1957
        %v2198 = vmul.f32 %v2196, %v2196
        %v2199 = vmul.f32 %v2197, %v2197
        %v2200 = vsub.f32 0.0, %v1937
        %v2201 = vsub.f32 0.0, %v1960
        %v2202 = vmul.f32 %v2200, 1.442695
        %v2203 = vpow.pop %v2202
        %v2204 = vmul.f32 %v2201, 1.442695
        %v2205 = vpow.pop %v2204
        %v2206 = vmul.f32 %v2198, %v2203
        %v2207 = vmul.f32 %v2199, %v2205
        %v2208 = vadd.f32 %v2206, %v1937
        %v2209 = vadd.f32 %v2207, %v1960
        %v2210 = vadd.f32 %v2194, %v2208
        %v2211 = vadd.f32 %v2195, %v2209
        %v2212 = vsub.f32 %v247, %v1980
        %v2213 = vsub.f32 %v248, %v2003
        %v2214 = vmul.f32 %v2212, %v2212
        %v2215 = vmul.f32 %v2213, %v2213
        %v2216 = vsub.f32 0.0, %v1983
        %v2217 = vsub.f32 0.0, %v2006
        %v2218 = vmul.f32 %v2216, 1.442695
        %v2219 = vpow.pop %v2218
        %v2220 = vmul.f32 %v2217, 1.442695
        %v2221 = vpow.pop %v2220
        %v2222 = vmul.f32 %v2214, %v2219
        %v2223 = vmul.f32 %v2215, %v2221
        %v2224 = vadd.f32 %v2222, %v1983
        %v2225 = vadd.f32 %v2223, %v2006
        %v2226 = vadd.f32 %v2210, %v2224
        %v2227 = vadd.f32 %v2211, %v2225
        %v2228 = vsub.f32 %v247, %v2026
        %v2229 = vsub.f32 %v248, %v2049
        %v2230 = vmul.f32 %v2228, %v2228
        %v2231 = vmul.f32 %v2229, %v2229
        %v2232 = vsub.f32 0.0, %v2029
        %v2233 = vsub.f32 0.0, %v2052
        %v2234 = vmul.f32 %v2232, 1.442695
        %v2235 = vpow.pop %v2234
        %v2236 = vmul.f32 %v2233, 1.442695
        %v2237 = vpow.pop %v2236
        %v2238 = vmul.f32 %v2230, %v2235
        %v2239 = vmul.f32 %v2231, %v2237
        %v2240 = vadd.f32 %v2238, %v2029
        %v2241 = vadd.f32 %v2239, %v2052
        %v2242 = vadd.f32 %v2226, %v2240
        %v2243 = vadd.f32 %v2227, %v2241
        %v2244 = vsub.f32 %v247, %v2072
        %v2245 = vsub.f32 %v248, %v2095
        %v2246 = vmul.f32 %v2244, %v2244
        %v2247 = vmul.f32 %v2245, %v2245
        %v2248 = vsub.f32 0.0, %v2075
        %v2249 = vsub.f32 0.0, %v2098
        %v2250 = vmul.f32 %v2248, 1.442695
        %v2251 = vpow.pop %v2250
        %v2252 = vmul.f32 %v2249, 1.442695
        %v2253 = vpow.pop %v2252
        %v2254 = vmul.f32 %v2246, %v2251
        %v2255 = vmul.f32 %v2247, %v2253
        %v2256 = vadd.f32 %v2254, %v2075
        %v2257 = vadd.f32 %v2255, %v2098
        %v2258 = vadd.f32 %v2242, %v2256
        %v2259 = vadd.f32 %v2243, %v2257
        %v2260 = vmul.f32 %v461, %v461
        %v2261 = vmul.f32 %v463, %v463
        %v2262 = vmul.f32 %v389, %v389
        %v2263 = vmul.f32 %v409, %v409
        %v2264 = vadd.f32 %v2260, %v2262
        %v2265 = vadd.f32 %v2261, %v2263
        %v2266 = vsub.f32 %v2264, 1.0
        %v2267 = vsub.f32 %v2265, 1.0
        %v2268 = vsub.f32 %v2266, %v436
        %v2269 = vsub.f32 %v2267, %v456
        %v2270 = vmul.f32 %v2268, 0.5
        %v2271 = vmul.f32 %v2269, 0.5
        %v2272 = vsel %vm478, %v2270, 0.0
        %v2273 = vsel %vm478, %v2271, 0.0
        %v2274 = vadd.f32 %v2272, %v2273
        %2275 = vadd.xlane.f32.xlu0 %v2274
        %v2276 = vpop.xlane.xlu0 %2275
        %v2277 = vrot.slane %v2276, 4
        %v2278 = vadd.f32 %v2276, %v2277
        %v2279 = vrot.slane %v2278, 2
        %v2280 = vadd.f32 %v2278, %v2279
        %v2281 = vrot.slane %v2280, 1
        %v2282 = vadd.f32 %v2280, %v2281
        %s2283 = vtos %v2282
        %v2284 = vrcp.pop 2.0
        %v2285 = vmul.f32 2.0, %v2284
        %v2286 = vsub.f32 1.0, %v2285
        %v2287 = vmul.f32 %v2284, %v2286
        %v2288 = vadd.f32 %v2284, %v2287
        %vm2289 = vweird.f32 %v2284
        %v2290 = vsel %vm2289, %v2284, %v2288
        %s2291 = vtos %v2290
        %s2292 = smul.f32 %s2283, %s2291
        %v2293 = vadd.f32 %v2258, %v2259
        %2294 = vadd.xlane.f32.xlu0 %v2293
        %v2295 = vpop.xlane.xlu0 %2294
        %v2296 = vrot.slane %v2295, 4
        %v2297 = vadd.f32 %v2295, %v2296
        %v2298 = vrot.slane %v2297, 2
        %v2299 = vadd.f32 %v2297, %v2298
        %v2300 = vrot.slane %v2299, 1
        %v2301 = vadd.f32 %v2299, %v2300
        %s2302 = vtos %v2301
        %s2303 = smul.f32 %s2302, 0.5
        %v2304 = vrcp.pop 80.0
        %v2305 = vmul.f32 80.0, %v2304
        %v2306 = vsub.f32 1.0, %v2305
        %v2307 = vmul.f32 %v2304, %v2306
        %v2308 = vadd.f32 %v2304, %v2307
        %vm2309 = vweird.f32 %v2304
        %v2310 = vsel %vm2309, %v2304, %v2308
        %s2311 = vtos %v2310
        %s2312 = smul.f32 %s2303, %s2311
        %s2313 = sadd.f32 %s2292, %s2312
        %s2314 = sadd.f32 %s2313, 235.24826
        %v2315 = vstv %s2314
        %2316 = vst [vmem:[%s244] sm:$0xff] %v2315
        %s2317 = sand.u32 %s104, 1
        %s2318 = scalar_lea.sflag [#allocation5], %s2317
        %s2319 = sand.u32 %s104, 1
        %s2320 = smul.addr %s2319, 8
        %s2321 = scalar_lea.vmem [#allocation9], %s2320
        // Predicated region
        $region45: #{tpu_custom_call.1} parent=31 // pred_check
          %p2322 = pneg %p114
        $region46: #{tpu_custom_call.1} parent=31 // pred_check_branch
          %2324 = sbr.rel (%p2322) target = $region48
        $region47: #{tpu_custom_call.1} parent=31 // pred_region
          %2326 = vsyncadd %s2318, 0
          %s2327 = smul.addr %s23, 8
          %s2328 = scalar_lea.hbm %s3, %s2327
          %s2330 = sshll.u32 %s2321, 4
          %s2331 = int_to_ptr.vmem [resolvable:$true] %s2330
          %s2332 = sshll.u32 %s2328, 4
          %s2333 = int_to_ptr.hbm [resolvable:$true] %s2332
          %2335 = dma.vmem_to_hbm [thread:$0]  %s2331, 128, %s2333, %s2318
        $region48: #{tpu_custom_call.1} parent=31 // pred_fallthru
          _
      $region32: #{tpu_custom_call.1} parent=5 // pred_fallthru
        _
      %p2336 = scmp.le.s32.totalorder 2, %s18
      // Predicated region
      $region49: #{tpu_custom_call.1} parent=5 // pred_check
        %p2337 = pneg %p2336
      $region50: #{tpu_custom_call.1} parent=5 // pred_check_branch
        %2339 = sbr.rel (%p2337) target = $region52
      $region51: #{tpu_custom_call.1} parent=5 // pred_region
        %s2340 = ssub.s32 %s18, 2
        // Predicated region
        $region53: #{tpu_custom_call.1} parent=51 // pred_check
          %p2341 = pneg %p120
        $region54: #{tpu_custom_call.1} parent=51 // pred_check_branch
          %2343 = sbr.rel (%p2341) target = $region56
        $region55: #{tpu_custom_call.1} parent=51 // pred_region
          %s2344 = sand.u32 %s105, 1
          %s2345 = scalar_lea.sflag [#allocation5], %s2344
          %s2346 = sand.u32 %s105, 1
          %s2347 = smul.addr %s2346, 8
          %s2348 = scalar_lea.vmem [#allocation9], %s2347
          %2350 = dma.done %s2345, 128
        $region56: #{tpu_custom_call.1} parent=51 // pred_fallthru
          _
      $region52: #{tpu_custom_call.1} parent=5 // pred_fallthru
        _
    $region6: #{tpu_custom_call.1} parent=1 // loop_footer
      %s22 = sadd.s32 1, %s18
    $region7: #{tpu_custom_call.1} parent=1 // loop_footer_branch
      %17 = sbr.rel target = $region3
    $region8: #{tpu_custom_call.1} parent=1 // loop_exit
      _
    %2351 = vsyncpa [#allocation4], 1
    %s2352 = scalar_lea.sflag [#allocation4], 1
    %2353 = vsyncpa %s2352, 1
    %2354 = vsyncpa [#allocation7], 1
    %s2355 = scalar_lea.sflag [#allocation7], 1
    %2356 = vsyncpa %s2355, 1
    %2357 = vsyncpa [#allocation5], 1
    %s2358 = scalar_lea.sflag [#allocation5], 1
    %2359 = vsyncpa %s2358, 1

</llo_original>
